<compile_context>
chip_gen: v5e
topology: v5e:2x2
jax: 0.10.0
libtpu: 0.0.40
codegen_flags: <defaults>
</compile_context>

<pallas_src>
import jax
import jax.numpy as jnp
from jax.experimental import pallas as pl
from jax.experimental.pallas import tpu as pltpu

N, C, HW, NCLASSES = 2, 4, 16, 10   # small shapes consistent with input_size=16
NCLASSES_PAD = 128                  # lane-dense padded logits width
EPS = 1e-5


def aux_head_kernel(xf_ref, w1_ref, w2_ref, w3_ref, epi_ref, out_ref):
    wlane = w1_ref.shape[0]          # per-window lane width (C*25 padded to 128)
    c1 = w1_ref.shape[1]             # 128 conv1 output channels
    c2 = w2_ref.shape[1]             # 768 conv2 output channels
    n = xf_ref.shape[0]

    # Packed f32 epilogue constants (one DMA for all of them).
    s1 = epi_ref[0:1, 0:c1]                    # BN1 scale * (1/25 avg-pool)
    t1 = epi_ref[1:2, 0:c1]                    # BN1 shift
    s2 = epi_ref[2:3, :]                       # BN2 scale
    t2 = epi_ref[3:4, :]                       # BN2 shift
    b3 = epi_ref[4:5, 0:out_ref.shape[1]]      # Linear bias (padded)

    # Per-window: ReLU -> (sum-pool + 1x1 conv) matmul -> BN1+ReLU -> the
    # matching 128-row slab of the 2x2 conv weight, accumulated in f32.
    # Static Python loop (4 windows) -> fully unrolled, all slices 128-aligned.
    acc = jnp.zeros((n, c2), jnp.float32)
    for p in range(4):
        xf_p = jnp.maximum(xf_ref[:, p * wlane:(p + 1) * wlane], 0.0)
        h1 = jnp.dot(xf_p.astype(jnp.bfloat16), w1_ref[...],
                     preferred_element_type=jnp.float32)          # (N, 128)
        h1 = jnp.maximum(h1 * s1 + t1, 0.0)                        # pool/BN1 + ReLU (f32)
        acc = acc + jnp.dot(h1.astype(jnp.bfloat16),
                            w2_ref[p * c1:(p + 1) * c1, :],
                            preferred_element_type=jnp.float32)    # (N, 768)

    h2 = jnp.maximum(acc * s2 + t2, 0.0)                           # BN2 + ReLU (f32)

    # Linear (768 -> 128 padded classes), lane-dense output store.
    out_ref[...] = jnp.dot(h2.astype(jnp.bfloat16), w3_ref[...],
                           preferred_element_type=jnp.float32) + b3


def _wlane(c):
    return ((c * 25 + 127) // 128) * 128


def extract_windows_flat(x):
    # x: NCHW (N, C, 16, 16) -> (N, 4*wlane); window p occupies lanes
    # [p*wlane, p*wlane + C*25) with lane index c*25 + pix, zero-padded to wlane.
    n, c = x.shape[0], x.shape[1]
    wlane = _wlane(c)
    cols = []
    for hs in (0, 6):
        for ws in (0, 6):
            w = x[:, :, hs:hs + 5, ws:ws + 5].reshape(n, c * 25)
            cols.append(jnp.pad(w, ((0, 0), (0, wlane - c * 25))))
    return jnp.concatenate(cols, axis=1)


def aux_head_forward(x, p, n_classes=NCLASSES):
    xflat = extract_windows_flat(x)
    n = x.shape[0]
    args = (xflat, p["w1"], p["w2"], p["w3"], p["epi"])

    wlane, c1 = p["w1"].shape
    c2 = p["w2"].shape[1]
    flops = 2 * n * (4 * wlane * c1 + 4 * c1 * c2 + c2 * NCLASSES_PAD)
    bytes_accessed = (sum(int(a.size) * a.dtype.itemsize for a in args)
                      + n * NCLASSES_PAD * 4)

    out_pad = pl.pallas_call(
        aux_head_kernel,
        out_shape=jax.ShapeDtypeStruct((n, NCLASSES_PAD), jnp.float32),
        in_specs=[pl.BlockSpec(memory_space=pltpu.MemorySpace.VMEM)] * len(args),
        out_specs=pl.BlockSpec(memory_space=pltpu.MemorySpace.VMEM),
        cost_estimate=pl.CostEstimate(flops=flops, transcendentals=0,
                                      bytes_accessed=bytes_accessed),
    )(*args)
    return out_pad[:, :n_classes]


def init_raw_params(key, c, n_classes):
    ks = jax.random.split(key, 12)
    return dict(
        w1_t=jax.random.normal(ks[0], (128, c), jnp.float32) * 0.1,          # Conv2d(C,128,1) weight (squeezed)
        g1=1.0 + 0.1 * jax.random.normal(ks[1], (128,), jnp.float32),
        b1=0.1 * jax.random.normal(ks[2], (128,), jnp.float32),
        m1=0.1 * jax.random.normal(ks[3], (128,), jnp.float32),
        v1=jax.random.uniform(ks[4], (128,), jnp.float32, 0.5, 1.5),
        w2_t=jax.random.normal(ks[5], (768, 128, 2, 2), jnp.float32) * 0.05,  # Conv2d(128,768,2) weight
        g2=1.0 + 0.1 * jax.random.normal(ks[6], (768,), jnp.float32),
        b2=0.1 * jax.random.normal(ks[7], (768,), jnp.float32),
        m2=0.1 * jax.random.normal(ks[8], (768,), jnp.float32),
        v2=jax.random.uniform(ks[9], (768,), jnp.float32, 0.5, 1.5),
        w3_t=jax.random.normal(ks[10], (n_classes, 768), jnp.float32) * 0.05, # Linear weight
        b3=0.05 * jax.random.normal(ks[11], (n_classes,), jnp.float32),
    )


def pack_kernel_params(raw):
    c = raw["w1_t"].shape[1]
    n_classes = raw["w3_t"].shape[0]
    wlane = _wlane(c)

    # Folded (inference-mode) BatchNorm: y = x * s + t.  Scales stay f32.
    s1 = raw["g1"] / jnp.sqrt(raw["v1"] + EPS)
    t1 = raw["b1"] - raw["m1"] * s1
    s2 = raw["g2"] / jnp.sqrt(raw["v2"] + EPS)
    t2 = raw["b2"] - raw["m2"] * s2

    # Conv1 weight, repeated per pooled pixel (rows c*25 + pix), zero-padded to
    # wlane rows.  The 1/25 pooling factor and BN1 scale live in the epilogue.
    w1_rep = jnp.repeat(raw["w1_t"].T, 25, axis=0)                    # (C*25, 128)
    w1_pad = jnp.zeros((wlane, 128), jnp.float32).at[:c * 25, :].set(w1_rep)

    # Conv2 (768,128,2,2) flattened (kh, kw, c)-major -> rows p*128 + c (raw,
    # no BN fold).  Window index p = kh*2 + kw matches the wrapper's hs/ws order.
    w2_flat = raw["w2_t"].transpose(2, 3, 1, 0).reshape(4 * 128, 768)

    # Linear, padded to a lane-dense 128-wide output.
    w3_pad = jnp.zeros((768, NCLASSES_PAD), jnp.float32)
    w3_pad = w3_pad.at[:, :n_classes].set(raw["w3_t"].T)

    # Single packed f32 epilogue buffer (fewer DMA descriptors).
    epi = jnp.zeros((5, 768), jnp.float32)
    epi = epi.at[0, :128].set(s1 / 25.0)      # BN1 scale * avg-pool factor
    epi = epi.at[1, :128].set(t1)             # BN1 shift
    epi = epi.at[2, :].set(s2)                # BN2 scale
    epi = epi.at[3, :].set(t2)                # BN2 shift
    epi = epi.at[4, :n_classes].set(raw["b3"])

    return dict(
        w1=w1_pad.astype(jnp.bfloat16),       # bf16 weights: kernel is DMA-bound
        w2=w2_flat.astype(jnp.bfloat16),
        w3=w3_pad.astype(jnp.bfloat16),
        epi=epi,                               # f32 epilogue constants
    )


def packed_ref_forward(xflat, p, n_classes=NCLASSES):
    # bf16-consistent reference (same packed params / same rounding as the
    # kernel) for a tight numerical check.
    s1 = p["epi"][0:1, 0:128]
    t1 = p["epi"][1:2, 0:128]
    s2 = p["epi"][2:3, :]
    t2 = p["epi"][3:4, :]
    b3 = p["epi"][4:5, 0:NCLASSES_PAD]
    wlane = p["w1"].shape[0]
    acc = jnp.zeros((xflat.shape[0], 768), jnp.float32)
    for w in range(4):
        xf_p = jnp.maximum(xflat[:, w * wlane:(w + 1) * wlane], 0.0)
        h1 = jnp.dot(xf_p.astype(jnp.bfloat16), p["w1"],
                     preferred_element_type=jnp.float32)
        h1 = jnp.maximum(h1 * s1 + t1, 0.0)
        acc = acc + jnp.dot(h1.astype(jnp.bfloat16),
                            p["w2"][w * 128:(w + 1) * 128, :],
                            preferred_element_type=jnp.float32)
    h2 = jnp.maximum(acc * s2 + t2, 0.0)
    out = jnp.dot(h2.astype(jnp.bfloat16), p["w3"],
                  preferred_element_type=jnp.float32) + b3
    return out[:, :n_classes]


def ref_forward(x, r):
    # Pure-f32 JAX reference using the original (PyTorch-layout) parameters.
    x = jnp.maximum(x, 0.0)
    pooled = jnp.stack([x[:, :, hs:hs + 5, ws:ws + 5].mean(axis=(2, 3))
                        for hs in (0, 6) for ws in (0, 6)], axis=-1)   # (N,C,4)
    pooled = pooled.reshape(x.shape[0], x.shape[1], 2, 2)
    h = jnp.einsum('nchw,oc->nohw', pooled, r["w1_t"])
    h = ((h - r["m1"][None, :, None, None]) /
         jnp.sqrt(r["v1"][None, :, None, None] + EPS) *
         r["g1"][None, :, None, None] + r["b1"][None, :, None, None])
    h = jnp.maximum(h, 0.0)
    h = jnp.einsum('nchw,ochw->no', h, r["w2_t"])                      # 2x2 conv -> 1x1
    h = (h - r["m2"]) / jnp.sqrt(r["v2"] + EPS) * r["g2"] + r["b2"]
    h = jnp.maximum(h, 0.0)
    return h @ r["w3_t"].T + r["b3"]


if __name__ == "__main__":
    key = jax.random.PRNGKey(0)
    kx, kp = jax.random.split(key)
    x = jax.random.normal(kx, (N, C, HW, HW), jnp.float32)   # NCHW, like PyTorch

    raw = init_raw_params(kp, C, NCLASSES)
    params = pack_kernel_params(raw)

    logits = aux_head_forward(x, params)
    logits = jax.block_until_ready(logits)
    assert logits.shape == (N, NCLASSES)

    # Tight check vs a bf16-consistent reference (same packed params).
    ref_packed = packed_ref_forward(extract_windows_flat(x), params)
    assert jnp.allclose(logits, ref_packed, rtol=2e-3, atol=2e-3), (
        f"packed-ref max abs diff {jnp.max(jnp.abs(logits - ref_packed))}")

    # Looser check vs the pure-f32 PyTorch-equivalent reference (covers the
    # bf16 weight quantization error; BN scales stay f32, so this is tighter
    # than before in practice).
    ref = ref_forward(x, raw)
    assert jnp.allclose(logits, ref, rtol=2e-2, atol=2e-2), (
        f"f32-ref max abs diff {jnp.max(jnp.abs(logits - ref))}")

    print("KERNEL_OK")
</pallas_src>

<mosaic_0001>
module attributes {stable_mosaic.version = 11 : i64} {
  func.func @aux_head_kernel(%arg0: memref<2x512xf32, #tpu.memory_space<vmem>>, %arg1: memref<128x128xbf16, #tpu.memory_space<vmem>>, %arg2: memref<512x768xbf16, #tpu.memory_space<vmem>>, %arg3: memref<768x128xbf16, #tpu.memory_space<vmem>>, %arg4: memref<5x768xf32, #tpu.memory_space<vmem>>, %arg5: memref<2x128xf32, #tpu.memory_space<vmem>>) attributes {dimension_semantics = [], scalar_prefetch = 0 : i64, scratch_operands = 0 : i64, tpu.core_type = #tpu.core_type<tc>} {
    %c0 = arith.constant 0 : index
    %c0_0 = arith.constant 0 : index
    %0 = vector.load %arg4[%c0, %c0_0] : memref<5x768xf32, #tpu.memory_space<vmem>>, vector<1x128xf32>
    %c1 = arith.constant 1 : index
    %c0_1 = arith.constant 0 : index
    %1 = vector.load %arg4[%c1, %c0_1] : memref<5x768xf32, #tpu.memory_space<vmem>>, vector<1x128xf32>
    %c2 = arith.constant 2 : index
    %c0_2 = arith.constant 0 : index
    %2 = vector.load %arg4[%c2, %c0_2] : memref<5x768xf32, #tpu.memory_space<vmem>>, vector<1x768xf32>
    %c3 = arith.constant 3 : index
    %c0_3 = arith.constant 0 : index
    %3 = vector.load %arg4[%c3, %c0_3] : memref<5x768xf32, #tpu.memory_space<vmem>>, vector<1x768xf32>
    %c4 = arith.constant 4 : index
    %c0_4 = arith.constant 0 : index
    %4 = vector.load %arg4[%c4, %c0_4] : memref<5x768xf32, #tpu.memory_space<vmem>>, vector<1x128xf32>
    %cst = arith.constant 0.000000e+00 : f32
    %5 = vector.broadcast %cst : f32 to vector<2x768xf32>
    %c0_5 = arith.constant 0 : index
    %c0_6 = arith.constant 0 : index
    %6 = vector.load %arg0[%c0_5, %c0_6] : memref<2x512xf32, #tpu.memory_space<vmem>>, vector<2x128xf32>
    %cst_7 = arith.constant 0.000000e+00 : f32
    %7 = vector.broadcast %cst_7 : f32 to vector<2x128xf32>
    %8 = arith.maximumf %6, %7 : vector<2x128xf32>
    %9 = arith.truncf %8 : vector<2x128xf32> to vector<2x128xbf16>
    %c0_8 = arith.constant 0 : index
    %c0_9 = arith.constant 0 : index
    %10 = vector.load %arg1[%c0_8, %c0_9] : memref<128x128xbf16, #tpu.memory_space<vmem>>, vector<128x128xbf16>
    %cst_10 = arith.constant dense<0.000000e+00> : vector<2x128xf32>
    %11 = tpu.matmul %9, %10, %cst_10 {dimension_numbers = #tpu.dot_dimension_numbers<[1], [0], [0], [1], [0, 0, 1, 1], [], []>} : vector<2x128xbf16>, vector<128x128xbf16>, vector<2x128xf32> -> vector<2x128xf32>
    %12 = vector.broadcast %0 : vector<1x128xf32> to vector<2x128xf32>
    %13 = arith.mulf %11, %12 : vector<2x128xf32>
    %14 = vector.broadcast %1 : vector<1x128xf32> to vector<2x128xf32>
    %15 = arith.addf %13, %14 : vector<2x128xf32>
    %cst_11 = arith.constant 0.000000e+00 : f32
    %16 = vector.broadcast %cst_11 : f32 to vector<2x128xf32>
    %17 = arith.maximumf %15, %16 : vector<2x128xf32>
    %18 = arith.truncf %17 : vector<2x128xf32> to vector<2x128xbf16>
    %c0_12 = arith.constant 0 : index
    %c0_13 = arith.constant 0 : index
    %19 = vector.load %arg2[%c0_12, %c0_13] : memref<512x768xbf16, #tpu.memory_space<vmem>>, vector<128x768xbf16>
    %cst_14 = arith.constant dense<0.000000e+00> : vector<2x768xf32>
    %20 = tpu.matmul %18, %19, %cst_14 {dimension_numbers = #tpu.dot_dimension_numbers<[1], [0], [0], [1], [0, 0, 1, 1], [], []>} : vector<2x128xbf16>, vector<128x768xbf16>, vector<2x768xf32> -> vector<2x768xf32>
    %21 = arith.addf %5, %20 : vector<2x768xf32>
    %c0_15 = arith.constant 0 : index
    %c128 = arith.constant 128 : index
    %22 = vector.load %arg0[%c0_15, %c128] : memref<2x512xf32, #tpu.memory_space<vmem>>, vector<2x128xf32>
    %cst_16 = arith.constant 0.000000e+00 : f32
    %23 = vector.broadcast %cst_16 : f32 to vector<2x128xf32>
    %24 = arith.maximumf %22, %23 : vector<2x128xf32>
    %25 = arith.truncf %24 : vector<2x128xf32> to vector<2x128xbf16>
    %c0_17 = arith.constant 0 : index
    %c0_18 = arith.constant 0 : index
    %26 = vector.load %arg1[%c0_17, %c0_18] : memref<128x128xbf16, #tpu.memory_space<vmem>>, vector<128x128xbf16>
    %cst_19 = arith.constant dense<0.000000e+00> : vector<2x128xf32>
    %27 = tpu.matmul %25, %26, %cst_19 {dimension_numbers = #tpu.dot_dimension_numbers<[1], [0], [0], [1], [0, 0, 1, 1], [], []>} : vector<2x128xbf16>, vector<128x128xbf16>, vector<2x128xf32> -> vector<2x128xf32>
    %28 = vector.broadcast %0 : vector<1x128xf32> to vector<2x128xf32>
    %29 = arith.mulf %27, %28 : vector<2x128xf32>
    %30 = vector.broadcast %1 : vector<1x128xf32> to vector<2x128xf32>
    %31 = arith.addf %29, %30 : vector<2x128xf32>
    %cst_20 = arith.constant 0.000000e+00 : f32
    %32 = vector.broadcast %cst_20 : f32 to vector<2x128xf32>
    %33 = arith.maximumf %31, %32 : vector<2x128xf32>
    %34 = arith.truncf %33 : vector<2x128xf32> to vector<2x128xbf16>
    %c128_21 = arith.constant 128 : index
    %c0_22 = arith.constant 0 : index
    %35 = vector.load %arg2[%c128_21, %c0_22] : memref<512x768xbf16, #tpu.memory_space<vmem>>, vector<128x768xbf16>
    %cst_23 = arith.constant dense<0.000000e+00> : vector<2x768xf32>
    %36 = tpu.matmul %34, %35, %cst_23 {dimension_numbers = #tpu.dot_dimension_numbers<[1], [0], [0], [1], [0, 0, 1, 1], [], []>} : vector<2x128xbf16>, vector<128x768xbf16>, vector<2x768xf32> -> vector<2x768xf32>
    %37 = arith.addf %21, %36 : vector<2x768xf32>
    %c0_24 = arith.constant 0 : index
    %c256 = arith.constant 256 : index
    %38 = vector.load %arg0[%c0_24, %c256] : memref<2x512xf32, #tpu.memory_space<vmem>>, vector<2x128xf32>
    %cst_25 = arith.constant 0.000000e+00 : f32
    %39 = vector.broadcast %cst_25 : f32 to vector<2x128xf32>
    %40 = arith.maximumf %38, %39 : vector<2x128xf32>
    %41 = arith.truncf %40 : vector<2x128xf32> to vector<2x128xbf16>
    %c0_26 = arith.constant 0 : index
    %c0_27 = arith.constant 0 : index
    %42 = vector.load %arg1[%c0_26, %c0_27] : memref<128x128xbf16, #tpu.memory_space<vmem>>, vector<128x128xbf16>
    %cst_28 = arith.constant dense<0.000000e+00> : vector<2x128xf32>
    %43 = tpu.matmul %41, %42, %cst_28 {dimension_numbers = #tpu.dot_dimension_numbers<[1], [0], [0], [1], [0, 0, 1, 1], [], []>} : vector<2x128xbf16>, vector<128x128xbf16>, vector<2x128xf32> -> vector<2x128xf32>
    %44 = vector.broadcast %0 : vector<1x128xf32> to vector<2x128xf32>
    %45 = arith.mulf %43, %44 : vector<2x128xf32>
    %46 = vector.broadcast %1 : vector<1x128xf32> to vector<2x128xf32>
    %47 = arith.addf %45, %46 : vector<2x128xf32>
    %cst_29 = arith.constant 0.000000e+00 : f32
    %48 = vector.broadcast %cst_29 : f32 to vector<2x128xf32>
    %49 = arith.maximumf %47, %48 : vector<2x128xf32>
    %50 = arith.truncf %49 : vector<2x128xf32> to vector<2x128xbf16>
    %c256_30 = arith.constant 256 : index
    %c0_31 = arith.constant 0 : index
    %51 = vector.load %arg2[%c256_30, %c0_31] : memref<512x768xbf16, #tpu.memory_space<vmem>>, vector<128x768xbf16>
    %cst_32 = arith.constant dense<0.000000e+00> : vector<2x768xf32>
    %52 = tpu.matmul %50, %51, %cst_32 {dimension_numbers = #tpu.dot_dimension_numbers<[1], [0], [0], [1], [0, 0, 1, 1], [], []>} : vector<2x128xbf16>, vector<128x768xbf16>, vector<2x768xf32> -> vector<2x768xf32>
    %53 = arith.addf %37, %52 : vector<2x768xf32>
    %c0_33 = arith.constant 0 : index
    %c384 = arith.constant 384 : index
    %54 = vector.load %arg0[%c0_33, %c384] : memref<2x512xf32, #tpu.memory_space<vmem>>, vector<2x128xf32>
    %cst_34 = arith.constant 0.000000e+00 : f32
    %55 = vector.broadcast %cst_34 : f32 to vector<2x128xf32>
    %56 = arith.maximumf %54, %55 : vector<2x128xf32>
    %57 = arith.truncf %56 : vector<2x128xf32> to vector<2x128xbf16>
    %c0_35 = arith.constant 0 : index
    %c0_36 = arith.constant 0 : index
    %58 = vector.load %arg1[%c0_35, %c0_36] : memref<128x128xbf16, #tpu.memory_space<vmem>>, vector<128x128xbf16>
    %cst_37 = arith.constant dense<0.000000e+00> : vector<2x128xf32>
    %59 = tpu.matmul %57, %58, %cst_37 {dimension_numbers = #tpu.dot_dimension_numbers<[1], [0], [0], [1], [0, 0, 1, 1], [], []>} : vector<2x128xbf16>, vector<128x128xbf16>, vector<2x128xf32> -> vector<2x128xf32>
    %60 = vector.broadcast %0 : vector<1x128xf32> to vector<2x128xf32>
    %61 = arith.mulf %59, %60 : vector<2x128xf32>
    %62 = vector.broadcast %1 : vector<1x128xf32> to vector<2x128xf32>
    %63 = arith.addf %61, %62 : vector<2x128xf32>
    %cst_38 = arith.constant 0.000000e+00 : f32
    %64 = vector.broadcast %cst_38 : f32 to vector<2x128xf32>
    %65 = arith.maximumf %63, %64 : vector<2x128xf32>
    %66 = arith.truncf %65 : vector<2x128xf32> to vector<2x128xbf16>
    %c384_39 = arith.constant 384 : index
    %c0_40 = arith.constant 0 : index
    %67 = vector.load %arg2[%c384_39, %c0_40] : memref<512x768xbf16, #tpu.memory_space<vmem>>, vector<128x768xbf16>
    %cst_41 = arith.constant dense<0.000000e+00> : vector<2x768xf32>
    %68 = tpu.matmul %66, %67, %cst_41 {dimension_numbers = #tpu.dot_dimension_numbers<[1], [0], [0], [1], [0, 0, 1, 1], [], []>} : vector<2x128xbf16>, vector<128x768xbf16>, vector<2x768xf32> -> vector<2x768xf32>
    %69 = arith.addf %53, %68 : vector<2x768xf32>
    %70 = vector.broadcast %2 : vector<1x768xf32> to vector<2x768xf32>
    %71 = arith.mulf %69, %70 : vector<2x768xf32>
    %72 = vector.broadcast %3 : vector<1x768xf32> to vector<2x768xf32>
    %73 = arith.addf %71, %72 : vector<2x768xf32>
    %cst_42 = arith.constant 0.000000e+00 : f32
    %74 = vector.broadcast %cst_42 : f32 to vector<2x768xf32>
    %75 = arith.maximumf %73, %74 : vector<2x768xf32>
    %76 = arith.truncf %75 : vector<2x768xf32> to vector<2x768xbf16>
    %c0_43 = arith.constant 0 : index
    %c0_44 = arith.constant 0 : index
    %77 = vector.load %arg3[%c0_43, %c0_44] : memref<768x128xbf16, #tpu.memory_space<vmem>>, vector<768x128xbf16>
    %cst_45 = arith.constant dense<0.000000e+00> : vector<2x128xf32>
    %78 = tpu.matmul %76, %77, %cst_45 {dimension_numbers = #tpu.dot_dimension_numbers<[1], [0], [0], [1], [0, 0, 1, 1], [], []>} : vector<2x768xbf16>, vector<768x128xbf16>, vector<2x128xf32> -> vector<2x128xf32>
    %79 = vector.broadcast %4 : vector<1x128xf32> to vector<2x128xf32>
    %80 = arith.addf %78, %79 : vector<2x128xf32>
    %c0_46 = arith.constant 0 : index
    %c0_47 = arith.constant 0 : index
    %81 = vector.load %arg5[%c0_46, %c0_47] : memref<2x128xf32, #tpu.memory_space<vmem>>, vector<2x128xf32>
    tpu.vector_store %arg5[%c0_46, %c0_47], %80 {strides = array<i32>} : memref<2x128xf32, #tpu.memory_space<vmem>>, vector<2x128xf32>,
    return
  }
}

</mosaic_0001>

<llo_original>
// kernel: tpu_custom_call.1
$region0: #{tpu_custom_call.1}
  #allocation0 [shape = 'u32[]', space=smem, size = 0x4, offset = 0x4, fixed_abs, tag = 'smem constant byte address 0x4 - core index']
  #allocation1 [shape = 'u32[72,128]{1,0:T(1,128)}', space=vmem, size = 0x9000, scoped, tag = 'internal scratch']
  %s0 = inlined_call_operand.hbm [shape: f32[2,512], index: 0, kind: input, shape index: {}]
  %s1 = inlined_call_operand.hbm [shape: bf16[128,128], index: 1, kind: input, shape index: {}]
  %s2 = inlined_call_operand.hbm [shape: bf16[512,768], index: 2, kind: input, shape index: {}]
  %s3 = inlined_call_operand.hbm [shape: bf16[768,128], index: 3, kind: input, shape index: {}]
  %s4 = inlined_call_operand.hbm [shape: f32[5,768], index: 4, kind: input, shape index: {}]
  %s5 = inlined_call_operand.hbm [shape: f32[2,128], index: 5, kind: output, shape index: {}]
  %s6 = sld [smem:[#allocation0]]
  $region50: #{tpu_custom_call.1} parent=0
    _
  %s8 = ssub.s32 1, %s6
  %s9 = scalar_select 0, %s8, %s6
  $region1: #{tpu_custom_call.1} parent=0
    #allocation2 [shape = 'u8[4096]{0}', space=vmem, size = 0x1000, scoped, tag = 'input window, operand 0, single buffered']
    #allocation3 [shape = 's32[1]{0}', space=sflag, size = 0x4, scoped, tag = 'scoped memory for tpu_custom_call.1']
    #allocation4 [shape = 's32[1]{0}', space=sflag, size = 0x4, scoped, tag = 'scoped memory for tpu_custom_call.1']
    #allocation5 [shape = 'u8[32768]{0}', space=vmem, size = 0x8000, scoped, tag = 'input window, operand 1, single buffered']
    #allocation6 [shape = 's32[1]{0}', space=sflag, size = 0x4, scoped, tag = 'scoped memory for tpu_custom_call.1']
    #allocation7 [shape = 'u8[786432]{0}', space=vmem, size = 0xc0000, scoped, tag = 'input window, operand 2, single buffered']
    #allocation8 [shape = 'u8[196608]{0}', space=vmem, size = 0x30000, scoped, tag = 'input window, operand 3, single buffered']
    #allocation9 [shape = 's32[1]{0}', space=sflag, size = 0x4, scoped, tag = 'scoped memory for tpu_custom_call.1']
    #allocation10 [shape = 'u8[24576]{0}', space=vmem, size = 0x6000, scoped, tag = 'input window, operand 4, single buffered']
    #allocation11 [shape = 'u8[1024]{0}', space=vmem, size = 0x400, scoped, tag = 'output window, operand 0, single buffered']
    %10 = vsyncpa [#allocation3], 0
    %11 = vsyncpa [#allocation6], 0
    %12 = vsyncpa [#allocation9], 0
    %13 = vsyncpa [#allocation4], 0
    // Predicated region
    $region2: #{tpu_custom_call.1} parent=1 // pred_check
      _
    $region3: #{tpu_custom_call.1} parent=1 // pred_check_branch
      %15 = sbr.rel (0) target = $region5
    $region4: #{tpu_custom_call.1} parent=1 // pred_region
      %17 = vsyncadd [#allocation3], 0
      %s19 = sshll.u32 %s0, 4
      %s20 = int_to_ptr.hbm [resolvable:$true] %s19
      %s21 = sshll.u32 [#allocation2], 4
      %s22 = int_to_ptr.vmem [resolvable:$true] %s21
      %24 = dma.hbm_to_vmem [thread:$0]  %s20, 128, %s22, [#allocation3]
    $region5: #{tpu_custom_call.1} parent=1 // pred_fallthru
      _
    // Predicated region
    $region6: #{tpu_custom_call.1} parent=1 // pred_check
      _
    $region7: #{tpu_custom_call.1} parent=1 // pred_check_branch
      %26 = sbr.rel (0) target = $region9
    $region8: #{tpu_custom_call.1} parent=1 // pred_region
      %28 = vsyncadd [#allocation6], 0
      %s29 = sshll.u32 %s1, 4
      %s30 = int_to_ptr.hbm [resolvable:$true] %s29
      %s31 = sshll.u32 [#allocation5], 4
      %s32 = int_to_ptr.vmem [resolvable:$true] %s31
      %37 = dma.hbm_to_vmem [thread:$0]  %s30, 1024, %s32, [#allocation6], 64, 64, 4
    $region9: #{tpu_custom_call.1} parent=1 // pred_fallthru
      _
    // Predicated region
    $region10: #{tpu_custom_call.1} parent=1 // pred_check
      _
    $region11: #{tpu_custom_call.1} parent=1 // pred_check_branch
      %39 = sbr.rel (0) target = $region13
    $region12: #{tpu_custom_call.1} parent=1 // pred_region
      %41 = vsyncadd [#allocation6], 0
      %s42 = sshll.u32 %s2, 4
      %s43 = int_to_ptr.hbm [resolvable:$true] %s42
      %s44 = sshll.u32 [#allocation7], 4
      %s45 = int_to_ptr.vmem [resolvable:$true] %s44
      %50 = dma.hbm_to_vmem [thread:$0]  %s43, 24576, %s45, [#allocation6], 384, 384, 24
    $region13: #{tpu_custom_call.1} parent=1 // pred_fallthru
      _
    // Predicated region
    $region14: #{tpu_custom_call.1} parent=1 // pred_check
      _
    $region15: #{tpu_custom_call.1} parent=1 // pred_check_branch
      %52 = sbr.rel (0) target = $region17
    $region16: #{tpu_custom_call.1} parent=1 // pred_region
      %54 = vsyncadd [#allocation9], 0
      %s55 = sshll.u32 %s3, 4
      %s56 = int_to_ptr.hbm [resolvable:$true] %s55
      %s57 = sshll.u32 [#allocation8], 4
      %s58 = int_to_ptr.vmem [resolvable:$true] %s57
      %63 = dma.hbm_to_vmem [thread:$0]  %s56, 6144, %s58, [#allocation9], 64, 64, 4
    $region17: #{tpu_custom_call.1} parent=1 // pred_fallthru
      _
    // Predicated region
    $region18: #{tpu_custom_call.1} parent=1 // pred_check
      _
    $region19: #{tpu_custom_call.1} parent=1 // pred_check_branch
      %65 = sbr.rel (0) target = $region21
    $region20: #{tpu_custom_call.1} parent=1 // pred_region
      %67 = vsyncadd [#allocation9], 0
      %s69 = sshll.u32 %s4, 4
      %s70 = int_to_ptr.hbm [resolvable:$true] %s69
      %s71 = sshll.u32 [#allocation10], 4
      %s72 = int_to_ptr.vmem [resolvable:$true] %s71
      %74 = dma.hbm_to_vmem [thread:$0]  %s70, 768, %s72, [#allocation9]
    $region21: #{tpu_custom_call.1} parent=1 // pred_fallthru
      _
    // Predicated region
    $region22: #{tpu_custom_call.1} parent=1 // pred_check
      _
    $region23: #{tpu_custom_call.1} parent=1 // pred_check_branch
      %76 = sbr.rel (0) target = $region25
    $region24: #{tpu_custom_call.1} parent=1 // pred_region
      %78 = dma.done [#allocation3], 128
    $region25: #{tpu_custom_call.1} parent=1 // pred_fallthru
      _
    // Predicated region
    $region26: #{tpu_custom_call.1} parent=1 // pred_check
      _
    $region27: #{tpu_custom_call.1} parent=1 // pred_check_branch
      %80 = sbr.rel (0) target = $region29
    $region28: #{tpu_custom_call.1} parent=1 // pred_region
      %82 = dma.done [#allocation6], 1024
    $region29: #{tpu_custom_call.1} parent=1 // pred_fallthru
      _
    // Predicated region
    $region30: #{tpu_custom_call.1} parent=1 // pred_check
      _
    $region31: #{tpu_custom_call.1} parent=1 // pred_check_branch
      %84 = sbr.rel (0) target = $region33
    $region32: #{tpu_custom_call.1} parent=1 // pred_region
      %86 = dma.done [#allocation6], 24576
    $region33: #{tpu_custom_call.1} parent=1 // pred_fallthru
      _
    // Predicated region
    $region34: #{tpu_custom_call.1} parent=1 // pred_check
      _
    $region35: #{tpu_custom_call.1} parent=1 // pred_check_branch
      %88 = sbr.rel (0) target = $region37
    $region36: #{tpu_custom_call.1} parent=1 // pred_region
      %90 = dma.done [#allocation9], 6144
    $region37: #{tpu_custom_call.1} parent=1 // pred_fallthru
      _
    // Predicated region
    $region38: #{tpu_custom_call.1} parent=1 // pred_check
      _
    $region39: #{tpu_custom_call.1} parent=1 // pred_check_branch
      %92 = sbr.rel (0) target = $region41
    $region40: #{tpu_custom_call.1} parent=1 // pred_region
      %94 = dma.done [#allocation9], 768
    $region41: #{tpu_custom_call.1} parent=1 // pred_fallthru
      _
    %v95 = vld [vmem:[#allocation10] ss:$0 sm:$0xff]
    %v96 = vld [vmem:[#allocation10 + $0x1] ss:$0 sm:$0xff]
    %s97 = scalar_lea.vmem [#allocation10], 2
    %v98 = vld [vmem:[%s97] ss:$8 sm:$0xf]
    %v99 = vld [vmem:[%s97] ss:$8 sm:$0x30]
    %v100 = vor.u32 %v98, %v99
    %s101 = scalar_lea.vmem [#allocation10], 3
    %v102 = vld [vmem:[%s101] ss:$8 sm:$0xf]
    %v103 = vld [vmem:[%s101] ss:$8 sm:$0x30]
    %v104 = vor.u32 %v102, %v103
    %v105 = vld [vmem:[#allocation10 + $0x4] ss:$0 sm:$0xff]
    %v106 = vld [vmem:[#allocation2] sm:$0x3]
    %v107 = vmax.f32 %v106, 0.0
    %v108 = vpack.c.bf16 %v107, %v107
    %v109 = vld [vmem:[#allocation5] sm:$0xf]
    %v110 = vld [vmem:[#allocation5 + $0x4] sm:$0xf]
    %v111 = vld [vmem:[#allocation5 + $0x8] sm:$0xf]
    %v112 = vld [vmem:[#allocation5 + $0xc] sm:$0xf]
    %v113 = vld [vmem:[#allocation5 + $0x10] sm:$0xf]
    %v114 = vld [vmem:[#allocation5 + $0x14] sm:$0xf]
    %v115 = vld [vmem:[#allocation5 + $0x18] sm:$0xf]
    %v116 = vld [vmem:[#allocation5 + $0x1c] sm:$0xf]
    %v117 = vld [vmem:[#allocation5 + $0x20] sm:$0xf]
    %v118 = vld [vmem:[#allocation5 + $0x24] sm:$0xf]
    %v119 = vld [vmem:[#allocation5 + $0x28] sm:$0xf]
    %v120 = vld [vmem:[#allocation5 + $0x2c] sm:$0xf]
    %v121 = vld [vmem:[#allocation5 + $0x30] sm:$0xf]
    %v122 = vld [vmem:[#allocation5 + $0x34] sm:$0xf]
    %v123 = vld [vmem:[#allocation5 + $0x38] sm:$0xf]
    %v124 = vld [vmem:[#allocation5 + $0x3c] sm:$0xf]
    %v141 = vunpack.c.l.b16 %v109
    %v142 = vunpack.c.l.b16 %v110
    %v143 = vunpack.c.l.b16 %v111
    %v144 = vunpack.c.l.b16 %v112
    %v145 = vunpack.c.l.b16 %v113
    %v146 = vunpack.c.l.b16 %v114
    %v147 = vunpack.c.l.b16 %v115
    %v148 = vunpack.c.l.b16 %v116
    %v149 = vunpack.c.l.b16 %v117
    %v150 = vunpack.c.l.b16 %v118
    %v151 = vunpack.c.l.b16 %v119
    %v152 = vunpack.c.l.b16 %v120
    %v153 = vunpack.c.l.b16 %v121
    %v154 = vunpack.c.l.b16 %v122
    %v155 = vunpack.c.l.b16 %v123
    %v156 = vunpack.c.l.b16 %v124
    %v157 = vpack.c.b16 %v142, %v141
    %v158 = vpack.c.b16 %v144, %v143
    %v159 = vpack.c.b16 %v146, %v145
    %v160 = vpack.c.b16 %v148, %v147
    %v161 = vpack.c.b16 %v150, %v149
    %v162 = vpack.c.b16 %v152, %v151
    %v163 = vpack.c.b16 %v154, %v153
    %v164 = vpack.c.b16 %v156, %v155
    %173 = vmatpush.bf16.msra.mxu0 %v164
    %174 = vmatpush.bf16.msra.mxu0 %v163
    %175 = vmatpush.bf16.msra.mxu0 %v162
    %176 = vmatpush.bf16.msra.mxu0 %v161
    %177 = vmatpush.bf16.msra.mxu0 %v160
    %178 = vmatpush.bf16.msra.mxu0 %v159
    %179 = vmatpush.bf16.msra.mxu0 %v158
    %180 = vmatpush.bf16.msra.mxu0 %v157
    %181 = vmatmul.bf16.gmra.mxu0 %v108
    %v182 = vpop.f32.mrf.mxu0
    %v183 = vadd.f32 0.0, %v182
    %v184 = vpop.f32.mrf.mxu0
    %185 = vdwg.mxu0
    %v186 = vmul.f32 %v183, %v95
    %v187 = vadd.f32 %v186, %v96
    %v188 = vmax.f32 %v187, 0.0
    %v189 = vpack.c.bf16 %v188, %v188
    %v190 = vld [vmem:[#allocation7] sm:$0xff]
    %v191 = vld [vmem:[#allocation7 + $0x8] sm:$0xff]
    %v192 = vld [vmem:[#allocation7 + $0x10] sm:$0xff]
    %v193 = vld [vmem:[#allocation7 + $0x18] sm:$0xff]
    %v194 = vld [vmem:[#allocation7 + $0x20] sm:$0xff]
    %v195 = vld [vmem:[#allocation7 + $0x28] sm:$0xff]
    %v196 = vld [vmem:[#allocation7 + $0x30] sm:$0xff]
    %v197 = vld [vmem:[#allocation7 + $0x38] sm:$0xff]
    %v198 = vld [vmem:[#allocation7 + $0x40] sm:$0xff]
    %v199 = vld [vmem:[#allocation7 + $0x48] sm:$0xff]
    %v200 = vld [vmem:[#allocation7 + $0x50] sm:$0xff]
    %v201 = vld [vmem:[#allocation7 + $0x58] sm:$0xff]
    %v202 = vld [vmem:[#allocation7 + $0x60] sm:$0xff]
    %v203 = vld [vmem:[#allocation7 + $0x68] sm:$0xff]
    %v204 = vld [vmem:[#allocation7 + $0x70] sm:$0xff]
    %v205 = vld [vmem:[#allocation7 + $0x78] sm:$0xff]
    %v206 = vld [vmem:[#allocation7 + $0x80] sm:$0xff]
    %v207 = vld [vmem:[#allocation7 + $0x88] sm:$0xff]
    %v208 = vld [vmem:[#allocation7 + $0x90] sm:$0xff]
    %v209 = vld [vmem:[#allocation7 + $0x98] sm:$0xff]
    %v210 = vld [vmem:[#allocation7 + $0xa0] sm:$0xff]
    %v211 = vld [vmem:[#allocation7 + $0xa8] sm:$0xff]
    %v212 = vld [vmem:[#allocation7 + $0xb0] sm:$0xff]
    %v213 = vld [vmem:[#allocation7 + $0xb8] sm:$0xff]
    %v214 = vld [vmem:[#allocation7 + $0xc0] sm:$0xff]
    %v215 = vld [vmem:[#allocation7 + $0xc8] sm:$0xff]
    %v216 = vld [vmem:[#allocation7 + $0xd0] sm:$0xff]
    %v217 = vld [vmem:[#allocation7 + $0xd8] sm:$0xff]
    %v218 = vld [vmem:[#allocation7 + $0xe0] sm:$0xff]
    %v219 = vld [vmem:[#allocation7 + $0xe8] sm:$0xff]
    %v220 = vld [vmem:[#allocation7 + $0xf0] sm:$0xff]
    %v221 = vld [vmem:[#allocation7 + $0xf8] sm:$0xff]
    %v222 = vld [vmem:[#allocation7 + $0x100] sm:$0xff]
    %v223 = vld [vmem:[#allocation7 + $0x108] sm:$0xff]
    %v224 = vld [vmem:[#allocation7 + $0x110] sm:$0xff]
    %v225 = vld [vmem:[#allocation7 + $0x118] sm:$0xff]
    %v226 = vld [vmem:[#allocation7 + $0x120] sm:$0xff]
    %v227 = vld [vmem:[#allocation7 + $0x128] sm:$0xff]
    %v228 = vld [vmem:[#allocation7 + $0x130] sm:$0xff]
    %v229 = vld [vmem:[#allocation7 + $0x138] sm:$0xff]
    %v230 = vld [vmem:[#allocation7 + $0x140] sm:$0xff]
    %v231 = vld [vmem:[#allocation7 + $0x148] sm:$0xff]
    %v232 = vld [vmem:[#allocation7 + $0x150] sm:$0xff]
    %v233 = vld [vmem:[#allocation7 + $0x158] sm:$0xff]
    %v234 = vld [vmem:[#allocation7 + $0x160] sm:$0xff]
    %v235 = vld [vmem:[#allocation7 + $0x168] sm:$0xff]
    %v236 = vld [vmem:[#allocation7 + $0x170] sm:$0xff]
    %v237 = vld [vmem:[#allocation7 + $0x178] sm:$0xff]
    %v238 = vld [vmem:[#allocation2 + $0x2] sm:$0x3]
    %v239 = vmax.f32 %v238, 0.0
    %v240 = vpack.c.bf16 %v239, %v239
    %241 = vmatpush.bf16.msra.mxu0 %v164
    %242 = vmatpush.bf16.msra.mxu0 %v163
    %243 = vmatpush.bf16.msra.mxu0 %v162
    %244 = vmatpush.bf16.msra.mxu0 %v161
    %245 = vmatpush.bf16.msra.mxu0 %v160
    %246 = vmatpush.bf16.msra.mxu0 %v159
    %247 = vmatpush.bf16.msra.mxu0 %v158
    %248 = vmatpush.bf16.msra.mxu0 %v157
    %249 = vmatmul.bf16.gmra.mxu0 %v240
    %v250 = vpop.f32.mrf.mxu0
    %v251 = vadd.f32 0.0, %v250
    %v252 = vpop.f32.mrf.mxu0
    %253 = vdwg.mxu0
    %v254 = vmul.f32 %v251, %v95
    %v255 = vadd.f32 %v254, %v96
    %v256 = vmax.f32 %v255, 0.0
    %v257 = vpack.c.bf16 %v256, %v256
    %v258 = vld [vmem:[#allocation7 + $0x180] sm:$0xff]
    %v259 = vld [vmem:[#allocation7 + $0x188] sm:$0xff]
    %v260 = vld [vmem:[#allocation7 + $0x190] sm:$0xff]
    %v261 = vld [vmem:[#allocation7 + $0x198] sm:$0xff]
    %v262 = vld [vmem:[#allocation7 + $0x1a0] sm:$0xff]
    %v263 = vld [vmem:[#allocation7 + $0x1a8] sm:$0xff]
    %v264 = vld [vmem:[#allocation7 + $0x1b0] sm:$0xff]
    %v265 = vld [vmem:[#allocation7 + $0x1b8] sm:$0xff]
    %v266 = vld [vmem:[#allocation7 + $0x1c0] sm:$0xff]
    %v267 = vld [vmem:[#allocation7 + $0x1c8] sm:$0xff]
    %v268 = vld [vmem:[#allocation7 + $0x1d0] sm:$0xff]
    %v269 = vld [vmem:[#allocation7 + $0x1d8] sm:$0xff]
    %v270 = vld [vmem:[#allocation7 + $0x1e0] sm:$0xff]
    %v271 = vld [vmem:[#allocation7 + $0x1e8] sm:$0xff]
    %v272 = vld [vmem:[#allocation7 + $0x1f0] sm:$0xff]
    %v273 = vld [vmem:[#allocation7 + $0x1f8] sm:$0xff]
    %v274 = vld [vmem:[#allocation7 + $0x200] sm:$0xff]
    %v275 = vld [vmem:[#allocation7 + $0x208] sm:$0xff]
    %v276 = vld [vmem:[#allocation7 + $0x210] sm:$0xff]
    %v277 = vld [vmem:[#allocation7 + $0x218] sm:$0xff]
    %v278 = vld [vmem:[#allocation7 + $0x220] sm:$0xff]
    %v279 = vld [vmem:[#allocation7 + $0x228] sm:$0xff]
    %v280 = vld [vmem:[#allocation7 + $0x230] sm:$0xff]
    %v281 = vld [vmem:[#allocation7 + $0x238] sm:$0xff]
    %v282 = vld [vmem:[#allocation7 + $0x240] sm:$0xff]
    %v283 = vld [vmem:[#allocation7 + $0x248] sm:$0xff]
    %v284 = vld [vmem:[#allocation7 + $0x250] sm:$0xff]
    %v285 = vld [vmem:[#allocation7 + $0x258] sm:$0xff]
    %v286 = vld [vmem:[#allocation7 + $0x260] sm:$0xff]
    %v287 = vld [vmem:[#allocation7 + $0x268] sm:$0xff]
    %v288 = vld [vmem:[#allocation7 + $0x270] sm:$0xff]
    %v289 = vld [vmem:[#allocation7 + $0x278] sm:$0xff]
    %v290 = vld [vmem:[#allocation7 + $0x280] sm:$0xff]
    %v291 = vld [vmem:[#allocation7 + $0x288] sm:$0xff]
    %v292 = vld [vmem:[#allocation7 + $0x290] sm:$0xff]
    %v293 = vld [vmem:[#allocation7 + $0x298] sm:$0xff]
    %v294 = vld [vmem:[#allocation7 + $0x2a0] sm:$0xff]
    %v295 = vld [vmem:[#allocation7 + $0x2a8] sm:$0xff]
    %v296 = vld [vmem:[#allocation7 + $0x2b0] sm:$0xff]
    %v297 = vld [vmem:[#allocation7 + $0x2b8] sm:$0xff]
    %v298 = vld [vmem:[#allocation7 + $0x2c0] sm:$0xff]
    %v299 = vld [vmem:[#allocation7 + $0x2c8] sm:$0xff]
    %v300 = vld [vmem:[#allocation7 + $0x2d0] sm:$0xff]
    %v301 = vld [vmem:[#allocation7 + $0x2d8] sm:$0xff]
    %v302 = vld [vmem:[#allocation7 + $0x2e0] sm:$0xff]
    %v303 = vld [vmem:[#allocation7 + $0x2e8] sm:$0xff]
    %v304 = vld [vmem:[#allocation7 + $0x2f0] sm:$0xff]
    %v305 = vld [vmem:[#allocation7 + $0x2f8] sm:$0xff]
    %v354 = vunpack.c.l.b16 %v258
    %v355 = vunpack.c.h.b16 %v258
    %v356 = vunpack.c.l.b16 %v259
    %v357 = vunpack.c.h.b16 %v259
    %v358 = vunpack.c.l.b16 %v260
    %v359 = vunpack.c.h.b16 %v260
    %v360 = vunpack.c.l.b16 %v261
    %v361 = vunpack.c.h.b16 %v261
    %v362 = vunpack.c.l.b16 %v262
    %v363 = vunpack.c.h.b16 %v262
    %v364 = vunpack.c.l.b16 %v263
    %v365 = vunpack.c.h.b16 %v263
    %v366 = vunpack.c.l.b16 %v264
    %v367 = vunpack.c.h.b16 %v264
    %v368 = vunpack.c.l.b16 %v265
    %v369 = vunpack.c.h.b16 %v265
    %v370 = vunpack.c.l.b16 %v266
    %v371 = vunpack.c.h.b16 %v266
    %v372 = vunpack.c.l.b16 %v267
    %v373 = vunpack.c.h.b16 %v267
    %v374 = vunpack.c.l.b16 %v268
    %v375 = vunpack.c.h.b16 %v268
    %v376 = vunpack.c.l.b16 %v269
    %v377 = vunpack.c.h.b16 %v269
    %v378 = vunpack.c.l.b16 %v270
    %v379 = vunpack.c.h.b16 %v270
    %v380 = vunpack.c.l.b16 %v271
    %v381 = vunpack.c.h.b16 %v271
    %v382 = vunpack.c.l.b16 %v272
    %v383 = vunpack.c.h.b16 %v272
    %v384 = vunpack.c.l.b16 %v273
    %v385 = vunpack.c.h.b16 %v273
    %v386 = vunpack.c.l.b16 %v274
    %v387 = vunpack.c.h.b16 %v274
    %v388 = vunpack.c.l.b16 %v275
    %v389 = vunpack.c.h.b16 %v275
    %v390 = vunpack.c.l.b16 %v276
    %v391 = vunpack.c.h.b16 %v276
    %v392 = vunpack.c.l.b16 %v277
    %v393 = vunpack.c.h.b16 %v277
    %v394 = vunpack.c.l.b16 %v278
    %v395 = vunpack.c.h.b16 %v278
    %v396 = vunpack.c.l.b16 %v279
    %v397 = vunpack.c.h.b16 %v279
    %v398 = vunpack.c.l.b16 %v280
    %v399 = vunpack.c.h.b16 %v280
    %v400 = vunpack.c.l.b16 %v281
    %v401 = vunpack.c.h.b16 %v281
    %v402 = vunpack.c.l.b16 %v282
    %v403 = vunpack.c.h.b16 %v282
    %v404 = vunpack.c.l.b16 %v283
    %v405 = vunpack.c.h.b16 %v283
    %v406 = vunpack.c.l.b16 %v284
    %v407 = vunpack.c.h.b16 %v284
    %v408 = vunpack.c.l.b16 %v285
    %v409 = vunpack.c.h.b16 %v285
    %v410 = vunpack.c.l.b16 %v286
    %v411 = vunpack.c.h.b16 %v286
    %v412 = vunpack.c.l.b16 %v287
    %v413 = vunpack.c.h.b16 %v287
    %v414 = vunpack.c.l.b16 %v288
    %v415 = vunpack.c.h.b16 %v288
    %v416 = vunpack.c.l.b16 %v289
    %v417 = vunpack.c.h.b16 %v289
    %v418 = vunpack.c.l.b16 %v290
    %v419 = vunpack.c.h.b16 %v290
    %v420 = vunpack.c.l.b16 %v291
    %v421 = vunpack.c.h.b16 %v291
    %v422 = vunpack.c.l.b16 %v292
    %v423 = vunpack.c.h.b16 %v292
    %v424 = vunpack.c.l.b16 %v293
    %v425 = vunpack.c.h.b16 %v293
    %v426 = vunpack.c.l.b16 %v294
    %v427 = vunpack.c.h.b16 %v294
    %v428 = vunpack.c.l.b16 %v295
    %v429 = vunpack.c.h.b16 %v295
    %v430 = vunpack.c.l.b16 %v296
    %v431 = vunpack.c.h.b16 %v296
    %v432 = vunpack.c.l.b16 %v297
    %v433 = vunpack.c.h.b16 %v297
    %v434 = vunpack.c.l.b16 %v298
    %v435 = vunpack.c.h.b16 %v298
    %v436 = vunpack.c.l.b16 %v299
    %v437 = vunpack.c.h.b16 %v299
    %v438 = vunpack.c.l.b16 %v300
    %v439 = vunpack.c.h.b16 %v300
    %v440 = vunpack.c.l.b16 %v301
    %v441 = vunpack.c.h.b16 %v301
    %v442 = vunpack.c.l.b16 %v302
    %v443 = vunpack.c.h.b16 %v302
    %v444 = vunpack.c.l.b16 %v303
    %v445 = vunpack.c.h.b16 %v303
    %v446 = vunpack.c.l.b16 %v304
    %v447 = vunpack.c.h.b16 %v304
    %v448 = vunpack.c.l.b16 %v305
    %v449 = vunpack.c.h.b16 %v305
    %v450 = vpack.c.b16 %v360, %v354
    %v451 = vpack.c.b16 %v361, %v355
    %v452 = vpack.c.b16 %v362, %v356
    %v453 = vpack.c.b16 %v363, %v357
    %v454 = vpack.c.b16 %v364, %v358
    %v455 = vpack.c.b16 %v365, %v359
    %v456 = vpack.c.b16 %v372, %v366
    %v457 = vpack.c.b16 %v373, %v367
    %v458 = vpack.c.b16 %v374, %v368
    %v459 = vpack.c.b16 %v375, %v369
    %v460 = vpack.c.b16 %v376, %v370
    %v461 = vpack.c.b16 %v377, %v371
    %v462 = vpack.c.b16 %v384, %v378
    %v463 = vpack.c.b16 %v385, %v379
    %v464 = vpack.c.b16 %v386, %v380
    %v465 = vpack.c.b16 %v387, %v381
    %v466 = vpack.c.b16 %v388, %v382
    %v467 = vpack.c.b16 %v389, %v383
    %v468 = vpack.c.b16 %v396, %v390
    %v469 = vpack.c.b16 %v397, %v391
    %v470 = vpack.c.b16 %v398, %v392
    %v471 = vpack.c.b16 %v399, %v393
    %v472 = vpack.c.b16 %v400, %v394
    %v473 = vpack.c.b16 %v401, %v395
    %v474 = vpack.c.b16 %v408, %v402
    %v475 = vpack.c.b16 %v409, %v403
    %v476 = vpack.c.b16 %v410, %v404
    %v477 = vpack.c.b16 %v411, %v405
    %v478 = vpack.c.b16 %v412, %v406
    %v479 = vpack.c.b16 %v413, %v407
    %v480 = vpack.c.b16 %v420, %v414
    %v481 = vpack.c.b16 %v421, %v415
    %v482 = vpack.c.b16 %v422, %v416
    %v483 = vpack.c.b16 %v423, %v417
    %v484 = vpack.c.b16 %v424, %v418
    %v485 = vpack.c.b16 %v425, %v419
    %v486 = vpack.c.b16 %v432, %v426
    %v487 = vpack.c.b16 %v433, %v427
    %v488 = vpack.c.b16 %v434, %v428
    %v489 = vpack.c.b16 %v435, %v429
    %v490 = vpack.c.b16 %v436, %v430
    %v491 = vpack.c.b16 %v437, %v431
    %v492 = vpack.c.b16 %v444, %v438
    %v493 = vpack.c.b16 %v445, %v439
    %v494 = vpack.c.b16 %v446, %v440
    %v495 = vpack.c.b16 %v447, %v441
    %v496 = vpack.c.b16 %v448, %v442
    %v497 = vpack.c.b16 %v449, %v443
    %546 = vmatpush.bf16.msra.mxu0 %v492
    %547 = vmatpush.bf16.msra.mxu0 %v486
    %548 = vmatpush.bf16.msra.mxu0 %v480
    %549 = vmatpush.bf16.msra.mxu0 %v474
    %550 = vmatpush.bf16.msra.mxu0 %v468
    %551 = vmatpush.bf16.msra.mxu0 %v462
    %552 = vmatpush.bf16.msra.mxu0 %v456
    %553 = vmatpush.bf16.msra.mxu0 %v450
    %554 = vmatmul.bf16.gmra.mxu0 %v257
    %v555 = vpop.f32.mrf.mxu0
    %v556 = vadd.f32 0.0, %v555
    %v557 = vpop.f32.mrf.mxu0
    %558 = vdwg.mxu0
    %559 = vmatpush.bf16.msra.mxu0 %v493
    %560 = vmatpush.bf16.msra.mxu0 %v487
    %561 = vmatpush.bf16.msra.mxu0 %v481
    %562 = vmatpush.bf16.msra.mxu0 %v475
    %563 = vmatpush.bf16.msra.mxu0 %v469
    %564 = vmatpush.bf16.msra.mxu0 %v463
    %565 = vmatpush.bf16.msra.mxu0 %v457
    %566 = vmatpush.bf16.msra.mxu0 %v451
    %567 = vmatmul.bf16.gmra.mxu0 %v257
    %v568 = vpop.f32.mrf.mxu0
    %v569 = vadd.f32 0.0, %v568
    %v570 = vpop.f32.mrf.mxu0
    %571 = vdwg.mxu0
    %572 = vmatpush.bf16.msra.mxu0 %v494
    %573 = vmatpush.bf16.msra.mxu0 %v488
    %574 = vmatpush.bf16.msra.mxu0 %v482
    %575 = vmatpush.bf16.msra.mxu0 %v476
    %576 = vmatpush.bf16.msra.mxu0 %v470
    %577 = vmatpush.bf16.msra.mxu0 %v464
    %578 = vmatpush.bf16.msra.mxu0 %v458
    %579 = vmatpush.bf16.msra.mxu0 %v452
    %580 = vmatmul.bf16.gmra.mxu0 %v257
    %v581 = vpop.f32.mrf.mxu0
    %v582 = vadd.f32 0.0, %v581
    %v583 = vpop.f32.mrf.mxu0
    %584 = vdwg.mxu0
    %585 = vmatpush.bf16.msra.mxu0 %v495
    %586 = vmatpush.bf16.msra.mxu0 %v489
    %587 = vmatpush.bf16.msra.mxu0 %v483
    %588 = vmatpush.bf16.msra.mxu0 %v477
    %589 = vmatpush.bf16.msra.mxu0 %v471
    %590 = vmatpush.bf16.msra.mxu0 %v465
    %591 = vmatpush.bf16.msra.mxu0 %v459
    %592 = vmatpush.bf16.msra.mxu0 %v453
    %593 = vmatmul.bf16.gmra.mxu0 %v257
    %v594 = vpop.f32.mrf.mxu0
    %v595 = vadd.f32 0.0, %v594
    %v596 = vpop.f32.mrf.mxu0
    %597 = vdwg.mxu0
    %598 = vmatpush.bf16.msra.mxu0 %v496
    %599 = vmatpush.bf16.msra.mxu0 %v490
    %600 = vmatpush.bf16.msra.mxu0 %v484
    %601 = vmatpush.bf16.msra.mxu0 %v478
    %602 = vmatpush.bf16.msra.mxu0 %v472
    %603 = vmatpush.bf16.msra.mxu0 %v466
    %604 = vmatpush.bf16.msra.mxu0 %v460
    %605 = vmatpush.bf16.msra.mxu0 %v454
    %606 = vmatmul.bf16.gmra.mxu0 %v257
    %v607 = vpop.f32.mrf.mxu0
    %v608 = vadd.f32 0.0, %v607
    %v609 = vpop.f32.mrf.mxu0
    %610 = vdwg.mxu0
    %611 = vmatpush.bf16.msra.mxu0 %v497
    %612 = vmatpush.bf16.msra.mxu0 %v491
    %613 = vmatpush.bf16.msra.mxu0 %v485
    %614 = vmatpush.bf16.msra.mxu0 %v479
    %615 = vmatpush.bf16.msra.mxu0 %v473
    %616 = vmatpush.bf16.msra.mxu0 %v467
    %617 = vmatpush.bf16.msra.mxu0 %v461
    %618 = vmatpush.bf16.msra.mxu0 %v455
    %619 = vmatmul.bf16.gmra.mxu0 %v257
    %v620 = vpop.f32.mrf.mxu0
    %v621 = vadd.f32 0.0, %v620
    %v622 = vpop.f32.mrf.mxu0
    %623 = vdwg.mxu0
    %v672 = vunpack.c.l.b16 %v190
    %v673 = vunpack.c.h.b16 %v190
    %v674 = vunpack.c.l.b16 %v191
    %v675 = vunpack.c.h.b16 %v191
    %v676 = vunpack.c.l.b16 %v192
    %v677 = vunpack.c.h.b16 %v192
    %v678 = vunpack.c.l.b16 %v193
    %v679 = vunpack.c.h.b16 %v193
    %v680 = vunpack.c.l.b16 %v194
    %v681 = vunpack.c.h.b16 %v194
    %v682 = vunpack.c.l.b16 %v195
    %v683 = vunpack.c.h.b16 %v195
    %v684 = vunpack.c.l.b16 %v196
    %v685 = vunpack.c.h.b16 %v196
    %v686 = vunpack.c.l.b16 %v197
    %v687 = vunpack.c.h.b16 %v197
    %v688 = vunpack.c.l.b16 %v198
    %v689 = vunpack.c.h.b16 %v198
    %v690 = vunpack.c.l.b16 %v199
    %v691 = vunpack.c.h.b16 %v199
    %v692 = vunpack.c.l.b16 %v200
    %v693 = vunpack.c.h.b16 %v200
    %v694 = vunpack.c.l.b16 %v201
    %v695 = vunpack.c.h.b16 %v201
    %v696 = vunpack.c.l.b16 %v202
    %v697 = vunpack.c.h.b16 %v202
    %v698 = vunpack.c.l.b16 %v203
    %v699 = vunpack.c.h.b16 %v203
    %v700 = vunpack.c.l.b16 %v204
    %v701 = vunpack.c.h.b16 %v204
    %v702 = vunpack.c.l.b16 %v205
    %v703 = vunpack.c.h.b16 %v205
    %v704 = vunpack.c.l.b16 %v206
    %v705 = vunpack.c.h.b16 %v206
    %v706 = vunpack.c.l.b16 %v207
    %v707 = vunpack.c.h.b16 %v207
    %v708 = vunpack.c.l.b16 %v208
    %v709 = vunpack.c.h.b16 %v208
    %v710 = vunpack.c.l.b16 %v209
    %v711 = vunpack.c.h.b16 %v209
    %v712 = vunpack.c.l.b16 %v210
    %v713 = vunpack.c.h.b16 %v210
    %v714 = vunpack.c.l.b16 %v211
    %v715 = vunpack.c.h.b16 %v211
    %v716 = vunpack.c.l.b16 %v212
    %v717 = vunpack.c.h.b16 %v212
    %v718 = vunpack.c.l.b16 %v213
    %v719 = vunpack.c.h.b16 %v213
    %v720 = vunpack.c.l.b16 %v214
    %v721 = vunpack.c.h.b16 %v214
    %v722 = vunpack.c.l.b16 %v215
    %v723 = vunpack.c.h.b16 %v215
    %v724 = vunpack.c.l.b16 %v216
    %v725 = vunpack.c.h.b16 %v216
    %v726 = vunpack.c.l.b16 %v217
    %v727 = vunpack.c.h.b16 %v217
    %v728 = vunpack.c.l.b16 %v218
    %v729 = vunpack.c.h.b16 %v218
    %v730 = vunpack.c.l.b16 %v219
    %v731 = vunpack.c.h.b16 %v219
    %v732 = vunpack.c.l.b16 %v220
    %v733 = vunpack.c.h.b16 %v220
    %v734 = vunpack.c.l.b16 %v221
    %v735 = vunpack.c.h.b16 %v221
    %v736 = vunpack.c.l.b16 %v222
    %v737 = vunpack.c.h.b16 %v222
    %v738 = vunpack.c.l.b16 %v223
    %v739 = vunpack.c.h.b16 %v223
    %v740 = vunpack.c.l.b16 %v224
    %v741 = vunpack.c.h.b16 %v224
    %v742 = vunpack.c.l.b16 %v225
    %v743 = vunpack.c.h.b16 %v225
    %v744 = vunpack.c.l.b16 %v226
    %v745 = vunpack.c.h.b16 %v226
    %v746 = vunpack.c.l.b16 %v227
    %v747 = vunpack.c.h.b16 %v227
    %v748 = vunpack.c.l.b16 %v228
    %v749 = vunpack.c.h.b16 %v228
    %v750 = vunpack.c.l.b16 %v229
    %v751 = vunpack.c.h.b16 %v229
    %v752 = vunpack.c.l.b16 %v230
    %v753 = vunpack.c.h.b16 %v230
    %v754 = vunpack.c.l.b16 %v231
    %v755 = vunpack.c.h.b16 %v231
    %v756 = vunpack.c.l.b16 %v232
    %v757 = vunpack.c.h.b16 %v232
    %v758 = vunpack.c.l.b16 %v233
    %v759 = vunpack.c.h.b16 %v233
    %v760 = vunpack.c.l.b16 %v234
    %v761 = vunpack.c.h.b16 %v234
    %v762 = vunpack.c.l.b16 %v235
    %v763 = vunpack.c.h.b16 %v235
    %v764 = vunpack.c.l.b16 %v236
    %v765 = vunpack.c.h.b16 %v236
    %v766 = vunpack.c.l.b16 %v237
    %v767 = vunpack.c.h.b16 %v237
    %v768 = vpack.c.b16 %v678, %v672
    %v769 = vpack.c.b16 %v679, %v673
    %v770 = vpack.c.b16 %v680, %v674
    %v771 = vpack.c.b16 %v681, %v675
    %v772 = vpack.c.b16 %v682, %v676
    %v773 = vpack.c.b16 %v683, %v677
    %v774 = vpack.c.b16 %v690, %v684
    %v775 = vpack.c.b16 %v691, %v685
    %v776 = vpack.c.b16 %v692, %v686
    %v777 = vpack.c.b16 %v693, %v687
    %v778 = vpack.c.b16 %v694, %v688
    %v779 = vpack.c.b16 %v695, %v689
    %v780 = vpack.c.b16 %v702, %v696
    %v781 = vpack.c.b16 %v703, %v697
    %v782 = vpack.c.b16 %v704, %v698
    %v783 = vpack.c.b16 %v705, %v699
    %v784 = vpack.c.b16 %v706, %v700
    %v785 = vpack.c.b16 %v707, %v701
    %v786 = vpack.c.b16 %v714, %v708
    %v787 = vpack.c.b16 %v715, %v709
    %v788 = vpack.c.b16 %v716, %v710
    %v789 = vpack.c.b16 %v717, %v711
    %v790 = vpack.c.b16 %v718, %v712
    %v791 = vpack.c.b16 %v719, %v713
    %v792 = vpack.c.b16 %v726, %v720
    %v793 = vpack.c.b16 %v727, %v721
    %v794 = vpack.c.b16 %v728, %v722
    %v795 = vpack.c.b16 %v729, %v723
    %v796 = vpack.c.b16 %v730, %v724
    %v797 = vpack.c.b16 %v731, %v725
    %v798 = vpack.c.b16 %v738, %v732
    %v799 = vpack.c.b16 %v739, %v733
    %v800 = vpack.c.b16 %v740, %v734
    %v801 = vpack.c.b16 %v741, %v735
    %v802 = vpack.c.b16 %v742, %v736
    %v803 = vpack.c.b16 %v743, %v737
    %v804 = vpack.c.b16 %v750, %v744
    %v805 = vpack.c.b16 %v751, %v745
    %v806 = vpack.c.b16 %v752, %v746
    %v807 = vpack.c.b16 %v753, %v747
    %v808 = vpack.c.b16 %v754, %v748
    %v809 = vpack.c.b16 %v755, %v749
    %v810 = vpack.c.b16 %v762, %v756
    %v811 = vpack.c.b16 %v763, %v757
    %v812 = vpack.c.b16 %v764, %v758
    %v813 = vpack.c.b16 %v765, %v759
    %v814 = vpack.c.b16 %v766, %v760
    %v815 = vpack.c.b16 %v767, %v761
    %864 = vmatpush.bf16.msra.mxu0 %v810
    %865 = vmatpush.bf16.msra.mxu0 %v804
    %866 = vmatpush.bf16.msra.mxu0 %v798
    %867 = vmatpush.bf16.msra.mxu0 %v792
    %868 = vmatpush.bf16.msra.mxu0 %v786
    %869 = vmatpush.bf16.msra.mxu0 %v780
    %870 = vmatpush.bf16.msra.mxu0 %v774
    %871 = vmatpush.bf16.msra.mxu0 %v768
    %872 = vmatmul.bf16.gmra.mxu0 %v189
    %v873 = vpop.f32.mrf.mxu0
    %v874 = vadd.f32 %v556, %v873
    %v875 = vpop.f32.mrf.mxu0
    %876 = vdwg.mxu0
    %877 = vmatpush.bf16.msra.mxu0 %v811
    %878 = vmatpush.bf16.msra.mxu0 %v805
    %879 = vmatpush.bf16.msra.mxu0 %v799
    %880 = vmatpush.bf16.msra.mxu0 %v793
    %881 = vmatpush.bf16.msra.mxu0 %v787
    %882 = vmatpush.bf16.msra.mxu0 %v781
    %883 = vmatpush.bf16.msra.mxu0 %v775
    %884 = vmatpush.bf16.msra.mxu0 %v769
    %885 = vmatmul.bf16.gmra.mxu0 %v189
    %v886 = vpop.f32.mrf.mxu0
    %v887 = vadd.f32 %v569, %v886
    %v888 = vpop.f32.mrf.mxu0
    %889 = vdwg.mxu0
    %890 = vmatpush.bf16.msra.mxu0 %v812
    %891 = vmatpush.bf16.msra.mxu0 %v806
    %892 = vmatpush.bf16.msra.mxu0 %v800
    %893 = vmatpush.bf16.msra.mxu0 %v794
    %894 = vmatpush.bf16.msra.mxu0 %v788
    %895 = vmatpush.bf16.msra.mxu0 %v782
    %896 = vmatpush.bf16.msra.mxu0 %v776
    %897 = vmatpush.bf16.msra.mxu0 %v770
    %898 = vmatmul.bf16.gmra.mxu0 %v189
    %v899 = vpop.f32.mrf.mxu0
    %v900 = vadd.f32 %v582, %v899
    %v901 = vpop.f32.mrf.mxu0
    %902 = vdwg.mxu0
    %903 = vmatpush.bf16.msra.mxu0 %v813
    %904 = vmatpush.bf16.msra.mxu0 %v807
    %905 = vmatpush.bf16.msra.mxu0 %v801
    %906 = vmatpush.bf16.msra.mxu0 %v795
    %907 = vmatpush.bf16.msra.mxu0 %v789
    %908 = vmatpush.bf16.msra.mxu0 %v783
    %909 = vmatpush.bf16.msra.mxu0 %v777
    %910 = vmatpush.bf16.msra.mxu0 %v771
    %911 = vmatmul.bf16.gmra.mxu0 %v189
    %v912 = vpop.f32.mrf.mxu0
    %v913 = vadd.f32 %v595, %v912
    %v914 = vpop.f32.mrf.mxu0
    %915 = vdwg.mxu0
    %916 = vmatpush.bf16.msra.mxu0 %v814
    %917 = vmatpush.bf16.msra.mxu0 %v808
    %918 = vmatpush.bf16.msra.mxu0 %v802
    %919 = vmatpush.bf16.msra.mxu0 %v796
    %920 = vmatpush.bf16.msra.mxu0 %v790
    %921 = vmatpush.bf16.msra.mxu0 %v784
    %922 = vmatpush.bf16.msra.mxu0 %v778
    %923 = vmatpush.bf16.msra.mxu0 %v772
    %924 = vmatmul.bf16.gmra.mxu0 %v189
    %v925 = vpop.f32.mrf.mxu0
    %v926 = vadd.f32 %v608, %v925
    %v927 = vpop.f32.mrf.mxu0
    %928 = vdwg.mxu0
    %929 = vmatpush.bf16.msra.mxu0 %v815
    %930 = vmatpush.bf16.msra.mxu0 %v809
    %931 = vmatpush.bf16.msra.mxu0 %v803
    %932 = vmatpush.bf16.msra.mxu0 %v797
    %933 = vmatpush.bf16.msra.mxu0 %v791
    %934 = vmatpush.bf16.msra.mxu0 %v785
    %935 = vmatpush.bf16.msra.mxu0 %v779
    %936 = vmatpush.bf16.msra.mxu0 %v773
    %937 = vmatmul.bf16.gmra.mxu0 %v189
    %v938 = vpop.f32.mrf.mxu0
    %v939 = vadd.f32 %v621, %v938
    %v940 = vpop.f32.mrf.mxu0
    %941 = vdwg.mxu0
    %v942 = vld [vmem:[#allocation2 + $0x4] sm:$0x3]
    %v943 = vmax.f32 %v942, 0.0
    %v944 = vpack.c.bf16 %v943, %v943
    %945 = vmatpush.bf16.msra.mxu0 %v164
    %946 = vmatpush.bf16.msra.mxu0 %v163
    %947 = vmatpush.bf16.msra.mxu0 %v162
    %948 = vmatpush.bf16.msra.mxu0 %v161
    %949 = vmatpush.bf16.msra.mxu0 %v160
    %950 = vmatpush.bf16.msra.mxu0 %v159
    %951 = vmatpush.bf16.msra.mxu0 %v158
    %952 = vmatpush.bf16.msra.mxu0 %v157
    %953 = vmatmul.bf16.gmra.mxu0 %v944
    %v954 = vpop.f32.mrf.mxu0
    %v955 = vadd.f32 0.0, %v954
    %v956 = vpop.f32.mrf.mxu0
    %957 = vdwg.mxu0
    %v958 = vmul.f32 %v955, %v95
    %v959 = vadd.f32 %v958, %v96
    %v960 = vmax.f32 %v959, 0.0
    %v961 = vpack.c.bf16 %v960, %v960
    %v962 = vld [vmem:[#allocation7 + $0x300] sm:$0xff]
    %v963 = vld [vmem:[#allocation7 + $0x308] sm:$0xff]
    %v964 = vld [vmem:[#allocation7 + $0x310] sm:$0xff]
    %v965 = vld [vmem:[#allocation7 + $0x318] sm:$0xff]
    %v966 = vld [vmem:[#allocation7 + $0x320] sm:$0xff]
    %v967 = vld [vmem:[#allocation7 + $0x328] sm:$0xff]
    %v968 = vld [vmem:[#allocation7 + $0x330] sm:$0xff]
    %v969 = vld [vmem:[#allocation7 + $0x338] sm:$0xff]
    %v970 = vld [vmem:[#allocation7 + $0x340] sm:$0xff]
    %v971 = vld [vmem:[#allocation7 + $0x348] sm:$0xff]
    %v972 = vld [vmem:[#allocation7 + $0x350] sm:$0xff]
    %v973 = vld [vmem:[#allocation7 + $0x358] sm:$0xff]
    %v974 = vld [vmem:[#allocation7 + $0x360] sm:$0xff]
    %v975 = vld [vmem:[#allocation7 + $0x368] sm:$0xff]
    %v976 = vld [vmem:[#allocation7 + $0x370] sm:$0xff]
    %v977 = vld [vmem:[#allocation7 + $0x378] sm:$0xff]
    %v978 = vld [vmem:[#allocation7 + $0x380] sm:$0xff]
    %v979 = vld [vmem:[#allocation7 + $0x388] sm:$0xff]
    %v980 = vld [vmem:[#allocation7 + $0x390] sm:$0xff]
    %v981 = vld [vmem:[#allocation7 + $0x398] sm:$0xff]
    %v982 = vld [vmem:[#allocation7 + $0x3a0] sm:$0xff]
    %v983 = vld [vmem:[#allocation7 + $0x3a8] sm:$0xff]
    %v984 = vld [vmem:[#allocation7 + $0x3b0] sm:$0xff]
    %v985 = vld [vmem:[#allocation7 + $0x3b8] sm:$0xff]
    %v986 = vld [vmem:[#allocation7 + $0x3c0] sm:$0xff]
    %v987 = vld [vmem:[#allocation7 + $0x3c8] sm:$0xff]
    %v988 = vld [vmem:[#allocation7 + $0x3d0] sm:$0xff]
    %v989 = vld [vmem:[#allocation7 + $0x3d8] sm:$0xff]
    %v990 = vld [vmem:[#allocation7 + $0x3e0] sm:$0xff]
    %v991 = vld [vmem:[#allocation7 + $0x3e8] sm:$0xff]
    %v992 = vld [vmem:[#allocation7 + $0x3f0] sm:$0xff]
    %v993 = vld [vmem:[#allocation7 + $0x3f8] sm:$0xff]
    %v994 = vld [vmem:[#allocation7 + $0x400] sm:$0xff]
    %v995 = vld [vmem:[#allocation7 + $0x408] sm:$0xff]
    %v996 = vld [vmem:[#allocation7 + $0x410] sm:$0xff]
    %v997 = vld [vmem:[#allocation7 + $0x418] sm:$0xff]
    %v998 = vld [vmem:[#allocation7 + $0x420] sm:$0xff]
    %v999 = vld [vmem:[#allocation7 + $0x428] sm:$0xff]
    %v1000 = vld [vmem:[#allocation7 + $0x430] sm:$0xff]
    %v1001 = vld [vmem:[#allocation7 + $0x438] sm:$0xff]
    %v1002 = vld [vmem:[#allocation7 + $0x440] sm:$0xff]
    %v1003 = vld [vmem:[#allocation7 + $0x448] sm:$0xff]
    %v1004 = vld [vmem:[#allocation7 + $0x450] sm:$0xff]
    %v1005 = vld [vmem:[#allocation7 + $0x458] sm:$0xff]
    %v1006 = vld [vmem:[#allocation7 + $0x460] sm:$0xff]
    %v1007 = vld [vmem:[#allocation7 + $0x468] sm:$0xff]
    %v1008 = vld [vmem:[#allocation7 + $0x470] sm:$0xff]
    %v1009 = vld [vmem:[#allocation7 + $0x478] sm:$0xff]
    %v1058 = vunpack.c.l.b16 %v962
    %v1059 = vunpack.c.h.b16 %v962
    %v1060 = vunpack.c.l.b16 %v963
    %v1061 = vunpack.c.h.b16 %v963
    %v1062 = vunpack.c.l.b16 %v964
    %v1063 = vunpack.c.h.b16 %v964
    %v1064 = vunpack.c.l.b16 %v965
    %v1065 = vunpack.c.h.b16 %v965
    %v1066 = vunpack.c.l.b16 %v966
    %v1067 = vunpack.c.h.b16 %v966
    %v1068 = vunpack.c.l.b16 %v967
    %v1069 = vunpack.c.h.b16 %v967
    %v1070 = vunpack.c.l.b16 %v968
    %v1071 = vunpack.c.h.b16 %v968
    %v1072 = vunpack.c.l.b16 %v969
    %v1073 = vunpack.c.h.b16 %v969
    %v1074 = vunpack.c.l.b16 %v970
    %v1075 = vunpack.c.h.b16 %v970
    %v1076 = vunpack.c.l.b16 %v971
    %v1077 = vunpack.c.h.b16 %v971
    %v1078 = vunpack.c.l.b16 %v972
    %v1079 = vunpack.c.h.b16 %v972
    %v1080 = vunpack.c.l.b16 %v973
    %v1081 = vunpack.c.h.b16 %v973
    %v1082 = vunpack.c.l.b16 %v974
    %v1083 = vunpack.c.h.b16 %v974
    %v1084 = vunpack.c.l.b16 %v975
    %v1085 = vunpack.c.h.b16 %v975
    %v1086 = vunpack.c.l.b16 %v976
    %v1087 = vunpack.c.h.b16 %v976
    %v1088 = vunpack.c.l.b16 %v977
    %v1089 = vunpack.c.h.b16 %v977
    %v1090 = vunpack.c.l.b16 %v978
    %v1091 = vunpack.c.h.b16 %v978
    %v1092 = vunpack.c.l.b16 %v979
    %v1093 = vunpack.c.h.b16 %v979
    %v1094 = vunpack.c.l.b16 %v980
    %v1095 = vunpack.c.h.b16 %v980
    %v1096 = vunpack.c.l.b16 %v981
    %v1097 = vunpack.c.h.b16 %v981
    %v1098 = vunpack.c.l.b16 %v982
    %v1099 = vunpack.c.h.b16 %v982
    %v1100 = vunpack.c.l.b16 %v983
    %v1101 = vunpack.c.h.b16 %v983
    %v1102 = vunpack.c.l.b16 %v984
    %v1103 = vunpack.c.h.b16 %v984
    %v1104 = vunpack.c.l.b16 %v985
    %v1105 = vunpack.c.h.b16 %v985
    %v1106 = vunpack.c.l.b16 %v986
    %v1107 = vunpack.c.h.b16 %v986
    %v1108 = vunpack.c.l.b16 %v987
    %v1109 = vunpack.c.h.b16 %v987
    %v1110 = vunpack.c.l.b16 %v988
    %v1111 = vunpack.c.h.b16 %v988
    %v1112 = vunpack.c.l.b16 %v989
    %v1113 = vunpack.c.h.b16 %v989
    %v1114 = vunpack.c.l.b16 %v990
    %v1115 = vunpack.c.h.b16 %v990
    %v1116 = vunpack.c.l.b16 %v991
    %v1117 = vunpack.c.h.b16 %v991
    %v1118 = vunpack.c.l.b16 %v992
    %v1119 = vunpack.c.h.b16 %v992
    %v1120 = vunpack.c.l.b16 %v993
    %v1121 = vunpack.c.h.b16 %v993
    %v1122 = vunpack.c.l.b16 %v994
    %v1123 = vunpack.c.h.b16 %v994
    %v1124 = vunpack.c.l.b16 %v995
    %v1125 = vunpack.c.h.b16 %v995
    %v1126 = vunpack.c.l.b16 %v996
    %v1127 = vunpack.c.h.b16 %v996
    %v1128 = vunpack.c.l.b16 %v997
    %v1129 = vunpack.c.h.b16 %v997
    %v1130 = vunpack.c.l.b16 %v998
    %v1131 = vunpack.c.h.b16 %v998
    %v1132 = vunpack.c.l.b16 %v999
    %v1133 = vunpack.c.h.b16 %v999
    %v1134 = vunpack.c.l.b16 %v1000
    %v1135 = vunpack.c.h.b16 %v1000
    %v1136 = vunpack.c.l.b16 %v1001
    %v1137 = vunpack.c.h.b16 %v1001
    %v1138 = vunpack.c.l.b16 %v1002
    %v1139 = vunpack.c.h.b16 %v1002
    %v1140 = vunpack.c.l.b16 %v1003
    %v1141 = vunpack.c.h.b16 %v1003
    %v1142 = vunpack.c.l.b16 %v1004
    %v1143 = vunpack.c.h.b16 %v1004
    %v1144 = vunpack.c.l.b16 %v1005
    %v1145 = vunpack.c.h.b16 %v1005
    %v1146 = vunpack.c.l.b16 %v1006
    %v1147 = vunpack.c.h.b16 %v1006
    %v1148 = vunpack.c.l.b16 %v1007
    %v1149 = vunpack.c.h.b16 %v1007
    %v1150 = vunpack.c.l.b16 %v1008
    %v1151 = vunpack.c.h.b16 %v1008
    %v1152 = vunpack.c.l.b16 %v1009
    %v1153 = vunpack.c.h.b16 %v1009
    %v1154 = vpack.c.b16 %v1064, %v1058
    %v1155 = vpack.c.b16 %v1065, %v1059
    %v1156 = vpack.c.b16 %v1066, %v1060
    %v1157 = vpack.c.b16 %v1067, %v1061
    %v1158 = vpack.c.b16 %v1068, %v1062
    %v1159 = vpack.c.b16 %v1069, %v1063
    %v1160 = vpack.c.b16 %v1076, %v1070
    %v1161 = vpack.c.b16 %v1077, %v1071
    %v1162 = vpack.c.b16 %v1078, %v1072
    %v1163 = vpack.c.b16 %v1079, %v1073
    %v1164 = vpack.c.b16 %v1080, %v1074
    %v1165 = vpack.c.b16 %v1081, %v1075
    %v1166 = vpack.c.b16 %v1088, %v1082
    %v1167 = vpack.c.b16 %v1089, %v1083
    %v1168 = vpack.c.b16 %v1090, %v1084
    %v1169 = vpack.c.b16 %v1091, %v1085
    %v1170 = vpack.c.b16 %v1092, %v1086
    %v1171 = vpack.c.b16 %v1093, %v1087
    %v1172 = vpack.c.b16 %v1100, %v1094
    %v1173 = vpack.c.b16 %v1101, %v1095
    %v1174 = vpack.c.b16 %v1102, %v1096
    %v1175 = vpack.c.b16 %v1103, %v1097
    %v1176 = vpack.c.b16 %v1104, %v1098
    %v1177 = vpack.c.b16 %v1105, %v1099
    %v1178 = vpack.c.b16 %v1112, %v1106
    %v1179 = vpack.c.b16 %v1113, %v1107
    %v1180 = vpack.c.b16 %v1114, %v1108
    %v1181 = vpack.c.b16 %v1115, %v1109
    %v1182 = vpack.c.b16 %v1116, %v1110
    %v1183 = vpack.c.b16 %v1117, %v1111
    %v1184 = vpack.c.b16 %v1124, %v1118
    %v1185 = vpack.c.b16 %v1125, %v1119
    %v1186 = vpack.c.b16 %v1126, %v1120
    %v1187 = vpack.c.b16 %v1127, %v1121
    %v1188 = vpack.c.b16 %v1128, %v1122
    %v1189 = vpack.c.b16 %v1129, %v1123
    %v1190 = vpack.c.b16 %v1136, %v1130
    %v1191 = vpack.c.b16 %v1137, %v1131
    %v1192 = vpack.c.b16 %v1138, %v1132
    %v1193 = vpack.c.b16 %v1139, %v1133
    %v1194 = vpack.c.b16 %v1140, %v1134
    %v1195 = vpack.c.b16 %v1141, %v1135
    %v1196 = vpack.c.b16 %v1148, %v1142
    %v1197 = vpack.c.b16 %v1149, %v1143
    %v1198 = vpack.c.b16 %v1150, %v1144
    %v1199 = vpack.c.b16 %v1151, %v1145
    %v1200 = vpack.c.b16 %v1152, %v1146
    %v1201 = vpack.c.b16 %v1153, %v1147
    %1250 = vmatpush.bf16.msra.mxu0 %v1196
    %1251 = vmatpush.bf16.msra.mxu0 %v1190
    %1252 = vmatpush.bf16.msra.mxu0 %v1184
    %1253 = vmatpush.bf16.msra.mxu0 %v1178
    %1254 = vmatpush.bf16.msra.mxu0 %v1172
    %1255 = vmatpush.bf16.msra.mxu0 %v1166
    %1256 = vmatpush.bf16.msra.mxu0 %v1160
    %1257 = vmatpush.bf16.msra.mxu0 %v1154
    %1258 = vmatmul.bf16.gmra.mxu0 %v961
    %v1259 = vpop.f32.mrf.mxu0
    %v1260 = vadd.f32 0.0, %v1259
    %v1261 = vpop.f32.mrf.mxu0
    %1262 = vdwg.mxu0
    %1263 = vmatpush.bf16.msra.mxu0 %v1197
    %1264 = vmatpush.bf16.msra.mxu0 %v1191
    %1265 = vmatpush.bf16.msra.mxu0 %v1185
    %1266 = vmatpush.bf16.msra.mxu0 %v1179
    %1267 = vmatpush.bf16.msra.mxu0 %v1173
    %1268 = vmatpush.bf16.msra.mxu0 %v1167
    %1269 = vmatpush.bf16.msra.mxu0 %v1161
    %1270 = vmatpush.bf16.msra.mxu0 %v1155
    %1271 = vmatmul.bf16.gmra.mxu0 %v961
    %v1272 = vpop.f32.mrf.mxu0
    %v1273 = vadd.f32 0.0, %v1272
    %v1274 = vpop.f32.mrf.mxu0
    %1275 = vdwg.mxu0
    %1276 = vmatpush.bf16.msra.mxu0 %v1198
    %1277 = vmatpush.bf16.msra.mxu0 %v1192
    %1278 = vmatpush.bf16.msra.mxu0 %v1186
    %1279 = vmatpush.bf16.msra.mxu0 %v1180
    %1280 = vmatpush.bf16.msra.mxu0 %v1174
    %1281 = vmatpush.bf16.msra.mxu0 %v1168
    %1282 = vmatpush.bf16.msra.mxu0 %v1162
    %1283 = vmatpush.bf16.msra.mxu0 %v1156
    %1284 = vmatmul.bf16.gmra.mxu0 %v961
    %v1285 = vpop.f32.mrf.mxu0
    %v1286 = vadd.f32 0.0, %v1285
    %v1287 = vpop.f32.mrf.mxu0
    %1288 = vdwg.mxu0
    %1289 = vmatpush.bf16.msra.mxu0 %v1199
    %1290 = vmatpush.bf16.msra.mxu0 %v1193
    %1291 = vmatpush.bf16.msra.mxu0 %v1187
    %1292 = vmatpush.bf16.msra.mxu0 %v1181
    %1293 = vmatpush.bf16.msra.mxu0 %v1175
    %1294 = vmatpush.bf16.msra.mxu0 %v1169
    %1295 = vmatpush.bf16.msra.mxu0 %v1163
    %1296 = vmatpush.bf16.msra.mxu0 %v1157
    %1297 = vmatmul.bf16.gmra.mxu0 %v961
    %v1298 = vpop.f32.mrf.mxu0
    %v1299 = vadd.f32 0.0, %v1298
    %v1300 = vpop.f32.mrf.mxu0
    %1301 = vdwg.mxu0
    %1302 = vmatpush.bf16.msra.mxu0 %v1200
    %1303 = vmatpush.bf16.msra.mxu0 %v1194
    %1304 = vmatpush.bf16.msra.mxu0 %v1188
    %1305 = vmatpush.bf16.msra.mxu0 %v1182
    %1306 = vmatpush.bf16.msra.mxu0 %v1176
    %1307 = vmatpush.bf16.msra.mxu0 %v1170
    %1308 = vmatpush.bf16.msra.mxu0 %v1164
    %1309 = vmatpush.bf16.msra.mxu0 %v1158
    %1310 = vmatmul.bf16.gmra.mxu0 %v961
    %v1311 = vpop.f32.mrf.mxu0
    %v1312 = vadd.f32 0.0, %v1311
    %v1313 = vpop.f32.mrf.mxu0
    %1314 = vdwg.mxu0
    %1315 = vmatpush.bf16.msra.mxu0 %v1201
    %1316 = vmatpush.bf16.msra.mxu0 %v1195
    %1317 = vmatpush.bf16.msra.mxu0 %v1189
    %1318 = vmatpush.bf16.msra.mxu0 %v1183
    %1319 = vmatpush.bf16.msra.mxu0 %v1177
    %1320 = vmatpush.bf16.msra.mxu0 %v1171
    %1321 = vmatpush.bf16.msra.mxu0 %v1165
    %1322 = vmatpush.bf16.msra.mxu0 %v1159
    %1323 = vmatmul.bf16.gmra.mxu0 %v961
    %v1324 = vpop.f32.mrf.mxu0
    %v1325 = vadd.f32 0.0, %v1324
    %v1326 = vpop.f32.mrf.mxu0
    %1327 = vdwg.mxu0
    %v1328 = vadd.f32 %v874, %v1260
    %v1329 = vadd.f32 %v887, %v1273
    %v1330 = vadd.f32 %v900, %v1286
    %v1331 = vadd.f32 %v913, %v1299
    %v1332 = vadd.f32 %v926, %v1312
    %v1333 = vadd.f32 %v939, %v1325
    %v1334 = vld [vmem:[#allocation2 + $0x6] sm:$0x3]
    %v1335 = vmax.f32 %v1334, 0.0
    %v1336 = vpack.c.bf16 %v1335, %v1335
    %1337 = vmatpush.bf16.msra.mxu0 %v164
    %1338 = vmatpush.bf16.msra.mxu0 %v163
    %1339 = vmatpush.bf16.msra.mxu0 %v162
    %1340 = vmatpush.bf16.msra.mxu0 %v161
    %1341 = vmatpush.bf16.msra.mxu0 %v160
    %1342 = vmatpush.bf16.msra.mxu0 %v159
    %1343 = vmatpush.bf16.msra.mxu0 %v158
    %1344 = vmatpush.bf16.msra.mxu0 %v157
    %1345 = vmatmul.bf16.gmra.mxu0 %v1336
    %v1346 = vpop.f32.mrf.mxu0
    %v1347 = vadd.f32 0.0, %v1346
    %v1348 = vpop.f32.mrf.mxu0
    %1349 = vdwg.mxu0
    %v1350 = vmul.f32 %v1347, %v95
    %v1351 = vadd.f32 %v1350, %v96
    %v1352 = vmax.f32 %v1351, 0.0
    %v1353 = vpack.c.bf16 %v1352, %v1352
    %v1354 = vld [vmem:[#allocation7 + $0x480] sm:$0xff]
    %v1355 = vld [vmem:[#allocation7 + $0x488] sm:$0xff]
    %v1356 = vld [vmem:[#allocation7 + $0x490] sm:$0xff]
    %v1357 = vld [vmem:[#allocation7 + $0x498] sm:$0xff]
    %v1358 = vld [vmem:[#allocation7 + $0x4a0] sm:$0xff]
    %v1359 = vld [vmem:[#allocation7 + $0x4a8] sm:$0xff]
    %v1360 = vld [vmem:[#allocation7 + $0x4b0] sm:$0xff]
    %v1361 = vld [vmem:[#allocation7 + $0x4b8] sm:$0xff]
    %v1362 = vld [vmem:[#allocation7 + $0x4c0] sm:$0xff]
    %v1363 = vld [vmem:[#allocation7 + $0x4c8] sm:$0xff]
    %v1364 = vld [vmem:[#allocation7 + $0x4d0] sm:$0xff]
    %v1365 = vld [vmem:[#allocation7 + $0x4d8] sm:$0xff]
    %v1366 = vld [vmem:[#allocation7 + $0x4e0] sm:$0xff]
    %v1367 = vld [vmem:[#allocation7 + $0x4e8] sm:$0xff]
    %v1368 = vld [vmem:[#allocation7 + $0x4f0] sm:$0xff]
    %v1369 = vld [vmem:[#allocation7 + $0x4f8] sm:$0xff]
    %v1370 = vld [vmem:[#allocation7 + $0x500] sm:$0xff]
    %v1371 = vld [vmem:[#allocation7 + $0x508] sm:$0xff]
    %v1372 = vld [vmem:[#allocation7 + $0x510] sm:$0xff]
    %v1373 = vld [vmem:[#allocation7 + $0x518] sm:$0xff]
    %v1374 = vld [vmem:[#allocation7 + $0x520] sm:$0xff]
    %v1375 = vld [vmem:[#allocation7 + $0x528] sm:$0xff]
    %v1376 = vld [vmem:[#allocation7 + $0x530] sm:$0xff]
    %v1377 = vld [vmem:[#allocation7 + $0x538] sm:$0xff]
    %v1378 = vld [vmem:[#allocation7 + $0x540] sm:$0xff]
    %v1379 = vld [vmem:[#allocation7 + $0x548] sm:$0xff]
    %v1380 = vld [vmem:[#allocation7 + $0x550] sm:$0xff]
    %v1381 = vld [vmem:[#allocation7 + $0x558] sm:$0xff]
    %v1382 = vld [vmem:[#allocation7 + $0x560] sm:$0xff]
    %v1383 = vld [vmem:[#allocation7 + $0x568] sm:$0xff]
    %v1384 = vld [vmem:[#allocation7 + $0x570] sm:$0xff]
    %v1385 = vld [vmem:[#allocation7 + $0x578] sm:$0xff]
    %v1386 = vld [vmem:[#allocation7 + $0x580] sm:$0xff]
    %v1387 = vld [vmem:[#allocation7 + $0x588] sm:$0xff]
    %v1388 = vld [vmem:[#allocation7 + $0x590] sm:$0xff]
    %v1389 = vld [vmem:[#allocation7 + $0x598] sm:$0xff]
    %v1390 = vld [vmem:[#allocation7 + $0x5a0] sm:$0xff]
    %v1391 = vld [vmem:[#allocation7 + $0x5a8] sm:$0xff]
    %v1392 = vld [vmem:[#allocation7 + $0x5b0] sm:$0xff]
    %v1393 = vld [vmem:[#allocation7 + $0x5b8] sm:$0xff]
    %v1394 = vld [vmem:[#allocation7 + $0x5c0] sm:$0xff]
    %v1395 = vld [vmem:[#allocation7 + $0x5c8] sm:$0xff]
    %v1396 = vld [vmem:[#allocation7 + $0x5d0] sm:$0xff]
    %v1397 = vld [vmem:[#allocation7 + $0x5d8] sm:$0xff]
    %v1398 = vld [vmem:[#allocation7 + $0x5e0] sm:$0xff]
    %v1399 = vld [vmem:[#allocation7 + $0x5e8] sm:$0xff]
    %v1400 = vld [vmem:[#allocation7 + $0x5f0] sm:$0xff]
    %v1401 = vld [vmem:[#allocation7 + $0x5f8] sm:$0xff]
    %v1450 = vunpack.c.l.b16 %v1354
    %v1451 = vunpack.c.h.b16 %v1354
    %v1452 = vunpack.c.l.b16 %v1355
    %v1453 = vunpack.c.h.b16 %v1355
    %v1454 = vunpack.c.l.b16 %v1356
    %v1455 = vunpack.c.h.b16 %v1356
    %v1456 = vunpack.c.l.b16 %v1357
    %v1457 = vunpack.c.h.b16 %v1357
    %v1458 = vunpack.c.l.b16 %v1358
    %v1459 = vunpack.c.h.b16 %v1358
    %v1460 = vunpack.c.l.b16 %v1359
    %v1461 = vunpack.c.h.b16 %v1359
    %v1462 = vunpack.c.l.b16 %v1360
    %v1463 = vunpack.c.h.b16 %v1360
    %v1464 = vunpack.c.l.b16 %v1361
    %v1465 = vunpack.c.h.b16 %v1361
    %v1466 = vunpack.c.l.b16 %v1362
    %v1467 = vunpack.c.h.b16 %v1362
    %v1468 = vunpack.c.l.b16 %v1363
    %v1469 = vunpack.c.h.b16 %v1363
    %v1470 = vunpack.c.l.b16 %v1364
    %v1471 = vunpack.c.h.b16 %v1364
    %v1472 = vunpack.c.l.b16 %v1365
    %v1473 = vunpack.c.h.b16 %v1365
    %v1474 = vunpack.c.l.b16 %v1366
    %v1475 = vunpack.c.h.b16 %v1366
    %v1476 = vunpack.c.l.b16 %v1367
    %v1477 = vunpack.c.h.b16 %v1367
    %v1478 = vunpack.c.l.b16 %v1368
    %v1479 = vunpack.c.h.b16 %v1368
    %v1480 = vunpack.c.l.b16 %v1369
    %v1481 = vunpack.c.h.b16 %v1369
    %v1482 = vunpack.c.l.b16 %v1370
    %v1483 = vunpack.c.h.b16 %v1370
    %v1484 = vunpack.c.l.b16 %v1371
    %v1485 = vunpack.c.h.b16 %v1371
    %v1486 = vunpack.c.l.b16 %v1372
    %v1487 = vunpack.c.h.b16 %v1372
    %v1488 = vunpack.c.l.b16 %v1373
    %v1489 = vunpack.c.h.b16 %v1373
    %v1490 = vunpack.c.l.b16 %v1374
    %v1491 = vunpack.c.h.b16 %v1374
    %v1492 = vunpack.c.l.b16 %v1375
    %v1493 = vunpack.c.h.b16 %v1375
    %v1494 = vunpack.c.l.b16 %v1376
    %v1495 = vunpack.c.h.b16 %v1376
    %v1496 = vunpack.c.l.b16 %v1377
    %v1497 = vunpack.c.h.b16 %v1377
    %v1498 = vunpack.c.l.b16 %v1378
    %v1499 = vunpack.c.h.b16 %v1378
    %v1500 = vunpack.c.l.b16 %v1379
    %v1501 = vunpack.c.h.b16 %v1379
    %v1502 = vunpack.c.l.b16 %v1380
    %v1503 = vunpack.c.h.b16 %v1380
    %v1504 = vunpack.c.l.b16 %v1381
    %v1505 = vunpack.c.h.b16 %v1381
    %v1506 = vunpack.c.l.b16 %v1382
    %v1507 = vunpack.c.h.b16 %v1382
    %v1508 = vunpack.c.l.b16 %v1383
    %v1509 = vunpack.c.h.b16 %v1383
    %v1510 = vunpack.c.l.b16 %v1384
    %v1511 = vunpack.c.h.b16 %v1384
    %v1512 = vunpack.c.l.b16 %v1385
    %v1513 = vunpack.c.h.b16 %v1385
    %v1514 = vunpack.c.l.b16 %v1386
    %v1515 = vunpack.c.h.b16 %v1386
    %v1516 = vunpack.c.l.b16 %v1387
    %v1517 = vunpack.c.h.b16 %v1387
    %v1518 = vunpack.c.l.b16 %v1388
    %v1519 = vunpack.c.h.b16 %v1388
    %v1520 = vunpack.c.l.b16 %v1389
    %v1521 = vunpack.c.h.b16 %v1389
    %v1522 = vunpack.c.l.b16 %v1390
    %v1523 = vunpack.c.h.b16 %v1390
    %v1524 = vunpack.c.l.b16 %v1391
    %v1525 = vunpack.c.h.b16 %v1391
    %v1526 = vunpack.c.l.b16 %v1392
    %v1527 = vunpack.c.h.b16 %v1392
    %v1528 = vunpack.c.l.b16 %v1393
    %v1529 = vunpack.c.h.b16 %v1393
    %v1530 = vunpack.c.l.b16 %v1394
    %v1531 = vunpack.c.h.b16 %v1394
    %v1532 = vunpack.c.l.b16 %v1395
    %v1533 = vunpack.c.h.b16 %v1395
    %v1534 = vunpack.c.l.b16 %v1396
    %v1535 = vunpack.c.h.b16 %v1396
    %v1536 = vunpack.c.l.b16 %v1397
    %v1537 = vunpack.c.h.b16 %v1397
    %v1538 = vunpack.c.l.b16 %v1398
    %v1539 = vunpack.c.h.b16 %v1398
    %v1540 = vunpack.c.l.b16 %v1399
    %v1541 = vunpack.c.h.b16 %v1399
    %v1542 = vunpack.c.l.b16 %v1400
    %v1543 = vunpack.c.h.b16 %v1400
    %v1544 = vunpack.c.l.b16 %v1401
    %v1545 = vunpack.c.h.b16 %v1401
    %v1546 = vpack.c.b16 %v1456, %v1450
    %v1547 = vpack.c.b16 %v1457, %v1451
    %v1548 = vpack.c.b16 %v1458, %v1452
    %v1549 = vpack.c.b16 %v1459, %v1453
    %v1550 = vpack.c.b16 %v1460, %v1454
    %v1551 = vpack.c.b16 %v1461, %v1455
    %v1552 = vpack.c.b16 %v1468, %v1462
    %v1553 = vpack.c.b16 %v1469, %v1463
    %v1554 = vpack.c.b16 %v1470, %v1464
    %v1555 = vpack.c.b16 %v1471, %v1465
    %v1556 = vpack.c.b16 %v1472, %v1466
    %v1557 = vpack.c.b16 %v1473, %v1467
    %v1558 = vpack.c.b16 %v1480, %v1474
    %v1559 = vpack.c.b16 %v1481, %v1475
    %v1560 = vpack.c.b16 %v1482, %v1476
    %v1561 = vpack.c.b16 %v1483, %v1477
    %v1562 = vpack.c.b16 %v1484, %v1478
    %v1563 = vpack.c.b16 %v1485, %v1479
    %v1564 = vpack.c.b16 %v1492, %v1486
    %v1565 = vpack.c.b16 %v1493, %v1487
    %v1566 = vpack.c.b16 %v1494, %v1488
    %v1567 = vpack.c.b16 %v1495, %v1489
    %v1568 = vpack.c.b16 %v1496, %v1490
    %v1569 = vpack.c.b16 %v1497, %v1491
    %v1570 = vpack.c.b16 %v1504, %v1498
    %v1571 = vpack.c.b16 %v1505, %v1499
    %v1572 = vpack.c.b16 %v1506, %v1500
    %v1573 = vpack.c.b16 %v1507, %v1501
    %v1574 = vpack.c.b16 %v1508, %v1502
    %v1575 = vpack.c.b16 %v1509, %v1503
    %v1576 = vpack.c.b16 %v1516, %v1510
    %v1577 = vpack.c.b16 %v1517, %v1511
    %v1578 = vpack.c.b16 %v1518, %v1512
    %v1579 = vpack.c.b16 %v1519, %v1513
    %v1580 = vpack.c.b16 %v1520, %v1514
    %v1581 = vpack.c.b16 %v1521, %v1515
    %v1582 = vpack.c.b16 %v1528, %v1522
    %v1583 = vpack.c.b16 %v1529, %v1523
    %v1584 = vpack.c.b16 %v1530, %v1524
    %v1585 = vpack.c.b16 %v1531, %v1525
    %v1586 = vpack.c.b16 %v1532, %v1526
    %v1587 = vpack.c.b16 %v1533, %v1527
    %v1588 = vpack.c.b16 %v1540, %v1534
    %v1589 = vpack.c.b16 %v1541, %v1535
    %v1590 = vpack.c.b16 %v1542, %v1536
    %v1591 = vpack.c.b16 %v1543, %v1537
    %v1592 = vpack.c.b16 %v1544, %v1538
    %v1593 = vpack.c.b16 %v1545, %v1539
    %1642 = vmatpush.bf16.msra.mxu0 %v1588
    %1643 = vmatpush.bf16.msra.mxu0 %v1582
    %1644 = vmatpush.bf16.msra.mxu0 %v1576
    %1645 = vmatpush.bf16.msra.mxu0 %v1570
    %1646 = vmatpush.bf16.msra.mxu0 %v1564
    %1647 = vmatpush.bf16.msra.mxu0 %v1558
    %1648 = vmatpush.bf16.msra.mxu0 %v1552
    %1649 = vmatpush.bf16.msra.mxu0 %v1546
    %1650 = vmatmul.bf16.gmra.mxu0 %v1353
    %v1651 = vpop.f32.mrf.mxu0
    %v1652 = vadd.f32 0.0, %v1651
    %v1653 = vpop.f32.mrf.mxu0
    %1654 = vdwg.mxu0
    %1655 = vmatpush.bf16.msra.mxu0 %v1589
    %1656 = vmatpush.bf16.msra.mxu0 %v1583
    %1657 = vmatpush.bf16.msra.mxu0 %v1577
    %1658 = vmatpush.bf16.msra.mxu0 %v1571
    %1659 = vmatpush.bf16.msra.mxu0 %v1565
    %1660 = vmatpush.bf16.msra.mxu0 %v1559
    %1661 = vmatpush.bf16.msra.mxu0 %v1553
    %1662 = vmatpush.bf16.msra.mxu0 %v1547
    %1663 = vmatmul.bf16.gmra.mxu0 %v1353
    %v1664 = vpop.f32.mrf.mxu0
    %v1665 = vadd.f32 0.0, %v1664
    %v1666 = vpop.f32.mrf.mxu0
    %1667 = vdwg.mxu0
    %1668 = vmatpush.bf16.msra.mxu0 %v1590
    %1669 = vmatpush.bf16.msra.mxu0 %v1584
    %1670 = vmatpush.bf16.msra.mxu0 %v1578
    %1671 = vmatpush.bf16.msra.mxu0 %v1572
    %1672 = vmatpush.bf16.msra.mxu0 %v1566
    %1673 = vmatpush.bf16.msra.mxu0 %v1560
    %1674 = vmatpush.bf16.msra.mxu0 %v1554
    %1675 = vmatpush.bf16.msra.mxu0 %v1548
    %1676 = vmatmul.bf16.gmra.mxu0 %v1353
    %v1677 = vpop.f32.mrf.mxu0
    %v1678 = vadd.f32 0.0, %v1677
    %v1679 = vpop.f32.mrf.mxu0
    %1680 = vdwg.mxu0
    %1681 = vmatpush.bf16.msra.mxu0 %v1591
    %1682 = vmatpush.bf16.msra.mxu0 %v1585
    %1683 = vmatpush.bf16.msra.mxu0 %v1579
    %1684 = vmatpush.bf16.msra.mxu0 %v1573
    %1685 = vmatpush.bf16.msra.mxu0 %v1567
    %1686 = vmatpush.bf16.msra.mxu0 %v1561
    %1687 = vmatpush.bf16.msra.mxu0 %v1555
    %1688 = vmatpush.bf16.msra.mxu0 %v1549
    %1689 = vmatmul.bf16.gmra.mxu0 %v1353
    %v1690 = vpop.f32.mrf.mxu0
    %v1691 = vadd.f32 0.0, %v1690
    %v1692 = vpop.f32.mrf.mxu0
    %1693 = vdwg.mxu0
    %1694 = vmatpush.bf16.msra.mxu0 %v1592
    %1695 = vmatpush.bf16.msra.mxu0 %v1586
    %1696 = vmatpush.bf16.msra.mxu0 %v1580
    %1697 = vmatpush.bf16.msra.mxu0 %v1574
    %1698 = vmatpush.bf16.msra.mxu0 %v1568
    %1699 = vmatpush.bf16.msra.mxu0 %v1562
    %1700 = vmatpush.bf16.msra.mxu0 %v1556
    %1701 = vmatpush.bf16.msra.mxu0 %v1550
    %1702 = vmatmul.bf16.gmra.mxu0 %v1353
    %v1703 = vpop.f32.mrf.mxu0
    %v1704 = vadd.f32 0.0, %v1703
    %v1705 = vpop.f32.mrf.mxu0
    %1706 = vdwg.mxu0
    %1707 = vmatpush.bf16.msra.mxu0 %v1593
    %1708 = vmatpush.bf16.msra.mxu0 %v1587
    %1709 = vmatpush.bf16.msra.mxu0 %v1581
    %1710 = vmatpush.bf16.msra.mxu0 %v1575
    %1711 = vmatpush.bf16.msra.mxu0 %v1569
    %1712 = vmatpush.bf16.msra.mxu0 %v1563
    %1713 = vmatpush.bf16.msra.mxu0 %v1557
    %1714 = vmatpush.bf16.msra.mxu0 %v1551
    %1715 = vmatmul.bf16.gmra.mxu0 %v1353
    %v1716 = vpop.f32.mrf.mxu0
    %v1717 = vadd.f32 0.0, %v1716
    %v1718 = vpop.f32.mrf.mxu0
    %1719 = vdwg.mxu0
    %v1720 = vadd.f32 %v1328, %v1652
    %v1721 = vadd.f32 %v1329, %v1665
    %v1722 = vadd.f32 %v1330, %v1678
    %v1723 = vadd.f32 %v1331, %v1691
    %v1724 = vadd.f32 %v1332, %v1704
    %v1725 = vadd.f32 %v1333, %v1717
    %v1727 = vperm.slane %v100, 0
    %v1728 = vperm.slane %v100, 1
    %v1729 = vperm.slane %v100, 2
    %v1730 = vperm.slane %v100, 3
    %v1731 = vperm.slane %v100, 4
    %v1732 = vperm.slane %v100, 5
    %v1739 = vmul.f32 %v1720, %v1727
    %v1740 = vmul.f32 %v1721, %v1728
    %v1741 = vmul.f32 %v1722, %v1729
    %v1742 = vmul.f32 %v1723, %v1730
    %v1743 = vmul.f32 %v1724, %v1731
    %v1744 = vmul.f32 %v1725, %v1732
    %v1746 = vperm.slane %v104, 0
    %v1747 = vperm.slane %v104, 1
    %v1748 = vperm.slane %v104, 2
    %v1749 = vperm.slane %v104, 3
    %v1750 = vperm.slane %v104, 4
    %v1751 = vperm.slane %v104, 5
    %v1758 = vadd.f32 %v1739, %v1746
    %v1759 = vadd.f32 %v1740, %v1747
    %v1760 = vadd.f32 %v1741, %v1748
    %v1761 = vadd.f32 %v1742, %v1749
    %v1762 = vadd.f32 %v1743, %v1750
    %v1763 = vadd.f32 %v1744, %v1751
    %v1764 = vmax.f32 %v1758, 0.0
    %v1765 = vmax.f32 %v1759, 0.0
    %v1766 = vmax.f32 %v1760, 0.0
    %v1767 = vmax.f32 %v1761, 0.0
    %v1768 = vmax.f32 %v1762, 0.0
    %v1769 = vmax.f32 %v1763, 0.0
    %v1770 = vpack.c.bf16 %v1764, %v1764
    %v1771 = vpack.c.bf16 %v1765, %v1765
    %v1772 = vpack.c.bf16 %v1766, %v1766
    %v1773 = vpack.c.bf16 %v1767, %v1767
    %v1774 = vpack.c.bf16 %v1768, %v1768
    %v1775 = vpack.c.bf16 %v1769, %v1769
    %v1776 = vld [vmem:[#allocation8] sm:$0xf]
    %v1777 = vld [vmem:[#allocation8 + $0x4] sm:$0xf]
    %v1778 = vld [vmem:[#allocation8 + $0x8] sm:$0xf]
    %v1779 = vld [vmem:[#allocation8 + $0xc] sm:$0xf]
    %v1780 = vld [vmem:[#allocation8 + $0x10] sm:$0xf]
    %v1781 = vld [vmem:[#allocation8 + $0x14] sm:$0xf]
    %v1782 = vld [vmem:[#allocation8 + $0x18] sm:$0xf]
    %v1783 = vld [vmem:[#allocation8 + $0x1c] sm:$0xf]
    %v1784 = vld [vmem:[#allocation8 + $0x20] sm:$0xf]
    %v1785 = vld [vmem:[#allocation8 + $0x24] sm:$0xf]
    %v1786 = vld [vmem:[#allocation8 + $0x28] sm:$0xf]
    %v1787 = vld [vmem:[#allocation8 + $0x2c] sm:$0xf]
    %v1788 = vld [vmem:[#allocation8 + $0x30] sm:$0xf]
    %v1789 = vld [vmem:[#allocation8 + $0x34] sm:$0xf]
    %v1790 = vld [vmem:[#allocation8 + $0x38] sm:$0xf]
    %v1791 = vld [vmem:[#allocation8 + $0x3c] sm:$0xf]
    %v1792 = vld [vmem:[#allocation8 + $0x40] sm:$0xf]
    %v1793 = vld [vmem:[#allocation8 + $0x44] sm:$0xf]
    %v1794 = vld [vmem:[#allocation8 + $0x48] sm:$0xf]
    %v1795 = vld [vmem:[#allocation8 + $0x4c] sm:$0xf]
    %v1796 = vld [vmem:[#allocation8 + $0x50] sm:$0xf]
    %v1797 = vld [vmem:[#allocation8 + $0x54] sm:$0xf]
    %v1798 = vld [vmem:[#allocation8 + $0x58] sm:$0xf]
    %v1799 = vld [vmem:[#allocation8 + $0x5c] sm:$0xf]
    %v1800 = vld [vmem:[#allocation8 + $0x60] sm:$0xf]
    %v1801 = vld [vmem:[#allocation8 + $0x64] sm:$0xf]
    %v1802 = vld [vmem:[#allocation8 + $0x68] sm:$0xf]
    %v1803 = vld [vmem:[#allocation8 + $0x6c] sm:$0xf]
    %v1804 = vld [vmem:[#allocation8 + $0x70] sm:$0xf]
    %v1805 = vld [vmem:[#allocation8 + $0x74] sm:$0xf]
    %v1806 = vld [vmem:[#allocation8 + $0x78] sm:$0xf]
    %v1807 = vld [vmem:[#allocation8 + $0x7c] sm:$0xf]
    %v1808 = vld [vmem:[#allocation8 + $0x80] sm:$0xf]
    %v1809 = vld [vmem:[#allocation8 + $0x84] sm:$0xf]
    %v1810 = vld [vmem:[#allocation8 + $0x88] sm:$0xf]
    %v1811 = vld [vmem:[#allocation8 + $0x8c] sm:$0xf]
    %v1812 = vld [vmem:[#allocation8 + $0x90] sm:$0xf]
    %v1813 = vld [vmem:[#allocation8 + $0x94] sm:$0xf]
    %v1814 = vld [vmem:[#allocation8 + $0x98] sm:$0xf]
    %v1815 = vld [vmem:[#allocation8 + $0x9c] sm:$0xf]
    %v1816 = vld [vmem:[#allocation8 + $0xa0] sm:$0xf]
    %v1817 = vld [vmem:[#allocation8 + $0xa4] sm:$0xf]
    %v1818 = vld [vmem:[#allocation8 + $0xa8] sm:$0xf]
    %v1819 = vld [vmem:[#allocation8 + $0xac] sm:$0xf]
    %v1820 = vld [vmem:[#allocation8 + $0xb0] sm:$0xf]
    %v1821 = vld [vmem:[#allocation8 + $0xb4] sm:$0xf]
    %v1822 = vld [vmem:[#allocation8 + $0xb8] sm:$0xf]
    %v1823 = vld [vmem:[#allocation8 + $0xbc] sm:$0xf]
    %v1824 = vld [vmem:[#allocation8 + $0xc0] sm:$0xf]
    %v1825 = vld [vmem:[#allocation8 + $0xc4] sm:$0xf]
    %v1826 = vld [vmem:[#allocation8 + $0xc8] sm:$0xf]
    %v1827 = vld [vmem:[#allocation8 + $0xcc] sm:$0xf]
    %v1828 = vld [vmem:[#allocation8 + $0xd0] sm:$0xf]
    %v1829 = vld [vmem:[#allocation8 + $0xd4] sm:$0xf]
    %v1830 = vld [vmem:[#allocation8 + $0xd8] sm:$0xf]
    %v1831 = vld [vmem:[#allocation8 + $0xdc] sm:$0xf]
    %v1832 = vld [vmem:[#allocation8 + $0xe0] sm:$0xf]
    %v1833 = vld [vmem:[#allocation8 + $0xe4] sm:$0xf]
    %v1834 = vld [vmem:[#allocation8 + $0xe8] sm:$0xf]
    %v1835 = vld [vmem:[#allocation8 + $0xec] sm:$0xf]
    %v1836 = vld [vmem:[#allocation8 + $0xf0] sm:$0xf]
    %v1837 = vld [vmem:[#allocation8 + $0xf4] sm:$0xf]
    %v1838 = vld [vmem:[#allocation8 + $0xf8] sm:$0xf]
    %v1839 = vld [vmem:[#allocation8 + $0xfc] sm:$0xf]
    %v1840 = vld [vmem:[#allocation8 + $0x100] sm:$0xf]
    %v1841 = vld [vmem:[#allocation8 + $0x104] sm:$0xf]
    %v1842 = vld [vmem:[#allocation8 + $0x108] sm:$0xf]
    %v1843 = vld [vmem:[#allocation8 + $0x10c] sm:$0xf]
    %v1844 = vld [vmem:[#allocation8 + $0x110] sm:$0xf]
    %v1845 = vld [vmem:[#allocation8 + $0x114] sm:$0xf]
    %v1846 = vld [vmem:[#allocation8 + $0x118] sm:$0xf]
    %v1847 = vld [vmem:[#allocation8 + $0x11c] sm:$0xf]
    %v1848 = vld [vmem:[#allocation8 + $0x120] sm:$0xf]
    %v1849 = vld [vmem:[#allocation8 + $0x124] sm:$0xf]
    %v1850 = vld [vmem:[#allocation8 + $0x128] sm:$0xf]
    %v1851 = vld [vmem:[#allocation8 + $0x12c] sm:$0xf]
    %v1852 = vld [vmem:[#allocation8 + $0x130] sm:$0xf]
    %v1853 = vld [vmem:[#allocation8 + $0x134] sm:$0xf]
    %v1854 = vld [vmem:[#allocation8 + $0x138] sm:$0xf]
    %v1855 = vld [vmem:[#allocation8 + $0x13c] sm:$0xf]
    %v1856 = vld [vmem:[#allocation8 + $0x140] sm:$0xf]
    %v1857 = vld [vmem:[#allocation8 + $0x144] sm:$0xf]
    %v1858 = vld [vmem:[#allocation8 + $0x148] sm:$0xf]
    %v1859 = vld [vmem:[#allocation8 + $0x14c] sm:$0xf]
    %v1860 = vld [vmem:[#allocation8 + $0x150] sm:$0xf]
    %v1861 = vld [vmem:[#allocation8 + $0x154] sm:$0xf]
    %v1862 = vld [vmem:[#allocation8 + $0x158] sm:$0xf]
    %v1863 = vld [vmem:[#allocation8 + $0x15c] sm:$0xf]
    %v1864 = vld [vmem:[#allocation8 + $0x160] sm:$0xf]
    %v1865 = vld [vmem:[#allocation8 + $0x164] sm:$0xf]
    %v1866 = vld [vmem:[#allocation8 + $0x168] sm:$0xf]
    %v1867 = vld [vmem:[#allocation8 + $0x16c] sm:$0xf]
    %v1868 = vld [vmem:[#allocation8 + $0x170] sm:$0xf]
    %v1869 = vld [vmem:[#allocation8 + $0x174] sm:$0xf]
    %v1870 = vld [vmem:[#allocation8 + $0x178] sm:$0xf]
    %v1871 = vld [vmem:[#allocation8 + $0x17c] sm:$0xf]
    %v1968 = vunpack.c.l.b16 %v1776
    %v1969 = vunpack.c.l.b16 %v1777
    %v1970 = vunpack.c.l.b16 %v1778
    %v1971 = vunpack.c.l.b16 %v1779
    %v1972 = vunpack.c.l.b16 %v1780
    %v1973 = vunpack.c.l.b16 %v1781
    %v1974 = vunpack.c.l.b16 %v1782
    %v1975 = vunpack.c.l.b16 %v1783
    %v1976 = vunpack.c.l.b16 %v1784
    %v1977 = vunpack.c.l.b16 %v1785
    %v1978 = vunpack.c.l.b16 %v1786
    %v1979 = vunpack.c.l.b16 %v1787
    %v1980 = vunpack.c.l.b16 %v1788
    %v1981 = vunpack.c.l.b16 %v1789
    %v1982 = vunpack.c.l.b16 %v1790
    %v1983 = vunpack.c.l.b16 %v1791
    %v1984 = vunpack.c.l.b16 %v1792
    %v1985 = vunpack.c.l.b16 %v1793
    %v1986 = vunpack.c.l.b16 %v1794
    %v1987 = vunpack.c.l.b16 %v1795
    %v1988 = vunpack.c.l.b16 %v1796
    %v1989 = vunpack.c.l.b16 %v1797
    %v1990 = vunpack.c.l.b16 %v1798
    %v1991 = vunpack.c.l.b16 %v1799
    %v1992 = vunpack.c.l.b16 %v1800
    %v1993 = vunpack.c.l.b16 %v1801
    %v1994 = vunpack.c.l.b16 %v1802
    %v1995 = vunpack.c.l.b16 %v1803
    %v1996 = vunpack.c.l.b16 %v1804
    %v1997 = vunpack.c.l.b16 %v1805
    %v1998 = vunpack.c.l.b16 %v1806
    %v1999 = vunpack.c.l.b16 %v1807
    %v2000 = vunpack.c.l.b16 %v1808
    %v2001 = vunpack.c.l.b16 %v1809
    %v2002 = vunpack.c.l.b16 %v1810
    %v2003 = vunpack.c.l.b16 %v1811
    %v2004 = vunpack.c.l.b16 %v1812
    %v2005 = vunpack.c.l.b16 %v1813
    %v2006 = vunpack.c.l.b16 %v1814
    %v2007 = vunpack.c.l.b16 %v1815
    %v2008 = vunpack.c.l.b16 %v1816
    %v2009 = vunpack.c.l.b16 %v1817
    %v2010 = vunpack.c.l.b16 %v1818
    %v2011 = vunpack.c.l.b16 %v1819
    %v2012 = vunpack.c.l.b16 %v1820
    %v2013 = vunpack.c.l.b16 %v1821
    %v2014 = vunpack.c.l.b16 %v1822
    %v2015 = vunpack.c.l.b16 %v1823
    %v2016 = vunpack.c.l.b16 %v1824
    %v2017 = vunpack.c.l.b16 %v1825
    %v2018 = vunpack.c.l.b16 %v1826
    %v2019 = vunpack.c.l.b16 %v1827
    %v2020 = vunpack.c.l.b16 %v1828
    %v2021 = vunpack.c.l.b16 %v1829
    %v2022 = vunpack.c.l.b16 %v1830
    %v2023 = vunpack.c.l.b16 %v1831
    %v2024 = vunpack.c.l.b16 %v1832
    %v2025 = vunpack.c.l.b16 %v1833
    %v2026 = vunpack.c.l.b16 %v1834
    %v2027 = vunpack.c.l.b16 %v1835
    %v2028 = vunpack.c.l.b16 %v1836
    %v2029 = vunpack.c.l.b16 %v1837
    %v2030 = vunpack.c.l.b16 %v1838
    %v2031 = vunpack.c.l.b16 %v1839
    %v2032 = vunpack.c.l.b16 %v1840
    %v2033 = vunpack.c.l.b16 %v1841
    %v2034 = vunpack.c.l.b16 %v1842
    %v2035 = vunpack.c.l.b16 %v1843
    %v2036 = vunpack.c.l.b16 %v1844
    %v2037 = vunpack.c.l.b16 %v1845
    %v2038 = vunpack.c.l.b16 %v1846
    %v2039 = vunpack.c.l.b16 %v1847
    %v2040 = vunpack.c.l.b16 %v1848
    %v2041 = vunpack.c.l.b16 %v1849
    %v2042 = vunpack.c.l.b16 %v1850
    %v2043 = vunpack.c.l.b16 %v1851
    %v2044 = vunpack.c.l.b16 %v1852
    %v2045 = vunpack.c.l.b16 %v1853
    %v2046 = vunpack.c.l.b16 %v1854
    %v2047 = vunpack.c.l.b16 %v1855
    %v2048 = vunpack.c.l.b16 %v1856
    %v2049 = vunpack.c.l.b16 %v1857
    %v2050 = vunpack.c.l.b16 %v1858
    %v2051 = vunpack.c.l.b16 %v1859
    %v2052 = vunpack.c.l.b16 %v1860
    %v2053 = vunpack.c.l.b16 %v1861
    %v2054 = vunpack.c.l.b16 %v1862
    %v2055 = vunpack.c.l.b16 %v1863
    %v2056 = vunpack.c.l.b16 %v1864
    %v2057 = vunpack.c.l.b16 %v1865
    %v2058 = vunpack.c.l.b16 %v1866
    %v2059 = vunpack.c.l.b16 %v1867
    %v2060 = vunpack.c.l.b16 %v1868
    %v2061 = vunpack.c.l.b16 %v1869
    %v2062 = vunpack.c.l.b16 %v1870
    %v2063 = vunpack.c.l.b16 %v1871
    %v2064 = vpack.c.b16 %v1969, %v1968
    %v2065 = vpack.c.b16 %v1971, %v1970
    %v2066 = vpack.c.b16 %v1973, %v1972
    %v2067 = vpack.c.b16 %v1975, %v1974
    %v2068 = vpack.c.b16 %v1977, %v1976
    %v2069 = vpack.c.b16 %v1979, %v1978
    %v2070 = vpack.c.b16 %v1981, %v1980
    %v2071 = vpack.c.b16 %v1983, %v1982
    %v2072 = vpack.c.b16 %v1985, %v1984
    %v2073 = vpack.c.b16 %v1987, %v1986
    %v2074 = vpack.c.b16 %v1989, %v1988
    %v2075 = vpack.c.b16 %v1991, %v1990
    %v2076 = vpack.c.b16 %v1993, %v1992
    %v2077 = vpack.c.b16 %v1995, %v1994
    %v2078 = vpack.c.b16 %v1997, %v1996
    %v2079 = vpack.c.b16 %v1999, %v1998
    %v2080 = vpack.c.b16 %v2001, %v2000
    %v2081 = vpack.c.b16 %v2003, %v2002
    %v2082 = vpack.c.b16 %v2005, %v2004
    %v2083 = vpack.c.b16 %v2007, %v2006
    %v2084 = vpack.c.b16 %v2009, %v2008
    %v2085 = vpack.c.b16 %v2011, %v2010
    %v2086 = vpack.c.b16 %v2013, %v2012
    %v2087 = vpack.c.b16 %v2015, %v2014
    %v2088 = vpack.c.b16 %v2017, %v2016
    %v2089 = vpack.c.b16 %v2019, %v2018
    %v2090 = vpack.c.b16 %v2021, %v2020
    %v2091 = vpack.c.b16 %v2023, %v2022
    %v2092 = vpack.c.b16 %v2025, %v2024
    %v2093 = vpack.c.b16 %v2027, %v2026
    %v2094 = vpack.c.b16 %v2029, %v2028
    %v2095 = vpack.c.b16 %v2031, %v2030
    %v2096 = vpack.c.b16 %v2033, %v2032
    %v2097 = vpack.c.b16 %v2035, %v2034
    %v2098 = vpack.c.b16 %v2037, %v2036
    %v2099 = vpack.c.b16 %v2039, %v2038
    %v2100 = vpack.c.b16 %v2041, %v2040
    %v2101 = vpack.c.b16 %v2043, %v2042
    %v2102 = vpack.c.b16 %v2045, %v2044
    %v2103 = vpack.c.b16 %v2047, %v2046
    %v2104 = vpack.c.b16 %v2049, %v2048
    %v2105 = vpack.c.b16 %v2051, %v2050
    %v2106 = vpack.c.b16 %v2053, %v2052
    %v2107 = vpack.c.b16 %v2055, %v2054
    %v2108 = vpack.c.b16 %v2057, %v2056
    %v2109 = vpack.c.b16 %v2059, %v2058
    %v2110 = vpack.c.b16 %v2061, %v2060
    %v2111 = vpack.c.b16 %v2063, %v2062
    %2160 = vmatpush.bf16.msra.mxu0 %v2071
    %2161 = vmatpush.bf16.msra.mxu0 %v2070
    %2162 = vmatpush.bf16.msra.mxu0 %v2069
    %2163 = vmatpush.bf16.msra.mxu0 %v2068
    %2164 = vmatpush.bf16.msra.mxu0 %v2067
    %2165 = vmatpush.bf16.msra.mxu0 %v2066
    %2166 = vmatpush.bf16.msra.mxu0 %v2065
    %2167 = vmatpush.bf16.msra.mxu0 %v2064
    %2168 = vmatmul.bf16.gmra.mxu0 %v1770
    %v2169 = vpop.f32.mrf.mxu0
    %v2170 = vadd.f32 %v105, %v2169
    %v2171 = vpop.f32.mrf.mxu0
    %2172 = vdwg.mxu0
    %2173 = vmatpush.bf16.msra.mxu0 %v2079
    %2174 = vmatpush.bf16.msra.mxu0 %v2078
    %2175 = vmatpush.bf16.msra.mxu0 %v2077
    %2176 = vmatpush.bf16.msra.mxu0 %v2076
    %2177 = vmatpush.bf16.msra.mxu0 %v2075
    %2178 = vmatpush.bf16.msra.mxu0 %v2074
    %2179 = vmatpush.bf16.msra.mxu0 %v2073
    %2180 = vmatpush.bf16.msra.mxu0 %v2072
    %2181 = vmatmul.bf16.gmra.mxu0 %v1771
    %v2182 = vpop.f32.mrf.mxu0
    %v2183 = vadd.f32 %v2170, %v2182
    %v2184 = vpop.f32.mrf.mxu0
    %2185 = vdwg.mxu0
    %2186 = vmatpush.bf16.msra.mxu0 %v2087
    %2187 = vmatpush.bf16.msra.mxu0 %v2086
    %2188 = vmatpush.bf16.msra.mxu0 %v2085
    %2189 = vmatpush.bf16.msra.mxu0 %v2084
    %2190 = vmatpush.bf16.msra.mxu0 %v2083
    %2191 = vmatpush.bf16.msra.mxu0 %v2082
    %2192 = vmatpush.bf16.msra.mxu0 %v2081
    %2193 = vmatpush.bf16.msra.mxu0 %v2080
    %2194 = vmatmul.bf16.gmra.mxu0 %v1772
    %v2195 = vpop.f32.mrf.mxu0
    %v2196 = vadd.f32 %v2183, %v2195
    %v2197 = vpop.f32.mrf.mxu0
    %2198 = vdwg.mxu0
    %2199 = vmatpush.bf16.msra.mxu0 %v2095
    %2200 = vmatpush.bf16.msra.mxu0 %v2094
    %2201 = vmatpush.bf16.msra.mxu0 %v2093
    %2202 = vmatpush.bf16.msra.mxu0 %v2092
    %2203 = vmatpush.bf16.msra.mxu0 %v2091
    %2204 = vmatpush.bf16.msra.mxu0 %v2090
    %2205 = vmatpush.bf16.msra.mxu0 %v2089
    %2206 = vmatpush.bf16.msra.mxu0 %v2088
    %2207 = vmatmul.bf16.gmra.mxu0 %v1773
    %v2208 = vpop.f32.mrf.mxu0
    %v2209 = vadd.f32 %v2196, %v2208
    %v2210 = vpop.f32.mrf.mxu0
    %2211 = vdwg.mxu0
    %2212 = vmatpush.bf16.msra.mxu0 %v2103
    %2213 = vmatpush.bf16.msra.mxu0 %v2102
    %2214 = vmatpush.bf16.msra.mxu0 %v2101
    %2215 = vmatpush.bf16.msra.mxu0 %v2100
    %2216 = vmatpush.bf16.msra.mxu0 %v2099
    %2217 = vmatpush.bf16.msra.mxu0 %v2098
    %2218 = vmatpush.bf16.msra.mxu0 %v2097
    %2219 = vmatpush.bf16.msra.mxu0 %v2096
    %2220 = vmatmul.bf16.gmra.mxu0 %v1774
    %v2221 = vpop.f32.mrf.mxu0
    %v2222 = vadd.f32 %v2209, %v2221
    %v2223 = vpop.f32.mrf.mxu0
    %2224 = vdwg.mxu0
    %2225 = vmatpush.bf16.msra.mxu0 %v2111
    %2226 = vmatpush.bf16.msra.mxu0 %v2110
    %2227 = vmatpush.bf16.msra.mxu0 %v2109
    %2228 = vmatpush.bf16.msra.mxu0 %v2108
    %2229 = vmatpush.bf16.msra.mxu0 %v2107
    %2230 = vmatpush.bf16.msra.mxu0 %v2106
    %2231 = vmatpush.bf16.msra.mxu0 %v2105
    %2232 = vmatpush.bf16.msra.mxu0 %v2104
    %2233 = vmatmul.bf16.gmra.mxu0 %v1775
    %v2234 = vpop.f32.mrf.mxu0
    %v2235 = vadd.f32 %v2222, %v2234
    %v2236 = vpop.f32.mrf.mxu0
    %2237 = vdwg.mxu0
    %2238 = vst [vmem:[#allocation11] sm:$0x3] %v2235
    // Predicated region
    $region42: #{tpu_custom_call.1} parent=1 // pred_check
      _
    $region43: #{tpu_custom_call.1} parent=1 // pred_check_branch
      %2240 = sbr.rel (0) target = $region45
    $region44: #{tpu_custom_call.1} parent=1 // pred_region
      %2242 = vsyncadd [#allocation4], 0
      %s2244 = sshll.u32 [#allocation11], 4
      %s2245 = int_to_ptr.vmem [resolvable:$true] %s2244
      %s2246 = sshll.u32 %s5, 4
      %s2247 = int_to_ptr.hbm [resolvable:$true] %s2246
      %2249 = dma.vmem_to_hbm [thread:$0]  %s2245, 32, %s2247, [#allocation4]
    $region45: #{tpu_custom_call.1} parent=1 // pred_fallthru
      _
    // Predicated region
    $region46: #{tpu_custom_call.1} parent=1 // pred_check
      _
    $region47: #{tpu_custom_call.1} parent=1 // pred_check_branch
      %2251 = sbr.rel (0) target = $region49
    $region48: #{tpu_custom_call.1} parent=1 // pred_region
      %2253 = dma.done [#allocation4], 32
    $region49: #{tpu_custom_call.1} parent=1 // pred_fallthru
      _
    %2254 = vsyncpa [#allocation3], 1
    %2255 = vsyncpa [#allocation6], 1
    %2256 = vsyncpa [#allocation9], 1
    %2257 = vsyncpa [#allocation4], 1

</llo_original>
